<compile_context>
chip_gen: v5e
topology: v5e:2x2
jax: 0.10.0
libtpu: 0.0.40
codegen_flags: <defaults>
</compile_context>

<pallas_src>
import functools

import jax
import jax.numpy as jnp
from jax.experimental import pallas as pl
from jax.experimental.pallas import tpu as pltpu


def _round_up(n, m):
    return ((n + m - 1) // m) * m


def _batch_tile(B):
    """Batch tile size.

    - tiny batches: one sublane-aligned tile
    - mid batches (<=512): split into 2 grid steps so v7x's 2 TensorCores both work,
      with minimal batch padding
    - 512 < B <= 2048: 256-row tiles (>=3 steps, modest pad waste)
    - large batches: 1024 (or 512) rows per step to amortize per-grid-step overhead
      on single-TC v5e/v6e; weights stay VMEM-resident, only x/out tiles grow.
    """
    if B <= 16:
        return _round_up(B, 8)
    if B <= 512:
        return _round_up((B + 1) // 2, 8)
    if B <= 2048:
        return 256
    return 1024 if B % 1024 == 0 else 512


# -----------------------------------------------------------------------------
# Pallas kernels
# -----------------------------------------------------------------------------
def _hash_head_kernel(apply_tanh,
                      alpha_ref,                      # SMEM (1,1) f32
                      x_ref,                          # (TILE_B, E)  bf16
                      w1_ref, b1_ref,                 # (E,512)  bf16 / (1,512) f32
                      w2_ref, b2_ref,                 # (512,512) bf16 / (1,512) f32
                      w3_ref, b3_ref,                 # (512,Hp)  bf16 / (1,Hp) f32
                      out_ref):                       # (TILE_B, Hp) f32
    # Linear(E,512) + Tanh      (bf16 operands, f32 accumulate)
    h1 = jnp.tanh(
        jnp.dot(x_ref[...], w1_ref[...], preferred_element_type=jnp.float32)
        + b1_ref[...])
    # Linear(512,512) + Tanh
    h2 = jnp.tanh(
        jnp.dot(h1.astype(jnp.bfloat16), w2_ref[...],
                preferred_element_type=jnp.float32) + b2_ref[...])
    # Linear(512,H)  (= code_hash[:-1](inputs), i.e. pre-final-tanh activations)
    h3 = (jnp.dot(h2.astype(jnp.bfloat16), w3_ref[...],
                  preferred_element_type=jnp.float32) + b3_ref[...])

    if apply_tanh:
        # get_binary_hash(..., apply_tanh=True) -> tanh(alpha * h)
        out_ref[...] = jnp.tanh(alpha_ref[0, 0] * h3)
    else:
        # get_binary_hash(..., apply_tanh=False) -> sign(h); torch.sign => -1/0/+1
        out_ref[...] = jnp.where(h3 > 0, 1.0, jnp.where(h3 < 0, -1.0, 0.0))


def _classifier_kernel(x_ref, wc_ref, bc_ref, out_ref):
    # Linear(E, C): bf16 operands, f32 accumulation, lane-dense (Cp) output slab.
    out_ref[...] = (
        jnp.dot(x_ref[...], wc_ref[...], preferred_element_type=jnp.float32)
        + bc_ref[...])


def _fused_hash_classify_kernel(apply_tanh, alpha_ref, x_ref,
                                w1_ref, b1_ref, w2_ref, b2_ref, w3_ref, b3_ref,
                                wc_ref, bc_ref,
                                hash_ref, logits_ref):
    # Retrieval path: classifier + hash head share one x tile (single HBM read of x).
    x = x_ref[...]
    logits_ref[...] = (
        jnp.dot(x, wc_ref[...], preferred_element_type=jnp.float32) + bc_ref[...])
    h1 = jnp.tanh(
        jnp.dot(x, w1_ref[...], preferred_element_type=jnp.float32) + b1_ref[...])
    h2 = jnp.tanh(
        jnp.dot(h1.astype(jnp.bfloat16), w2_ref[...],
                preferred_element_type=jnp.float32) + b2_ref[...])
    h3 = (jnp.dot(h2.astype(jnp.bfloat16), w3_ref[...],
                  preferred_element_type=jnp.float32) + b3_ref[...])
    if apply_tanh:
        hash_ref[...] = jnp.tanh(alpha_ref[0, 0] * h3)
    else:
        hash_ref[...] = jnp.where(h3 > 0, 1.0, jnp.where(h3 < 0, -1.0, 0.0))


# -----------------------------------------------------------------------------
# Wrappers (grid / BlockSpecs). Weights arrive already padded + bf16-cast.
# -----------------------------------------------------------------------------
@functools.partial(jax.jit, static_argnames=("apply_tanh", "hash_dim"))
def hash_head_forward(embeddings, hp, alpha, *, apply_tanh, hash_dim):
    """Fused hash-MLP head. Returns tanh(alpha*h) if apply_tanh else sign(h), shape (B, H)."""
    x = embeddings.astype(jnp.bfloat16)               # bf16 input stream
    B, E = x.shape
    D1 = hp["w1"].shape[1]
    D2 = hp["w2"].shape[1]
    Hp = hp["w3"].shape[1]                            # lane-dense (padded) hash width

    TILE_B = _batch_tile(B)
    B_pad = _round_up(B, TILE_B)
    if B_pad != B:                                    # batch-only pad, only when needed
        x = jnp.pad(x, ((0, B_pad - B), (0, 0)))
    alpha_arr = jnp.asarray(alpha, jnp.float32).reshape(1, 1)

    kernel = functools.partial(_hash_head_kernel, bool(apply_tanh))
    out = pl.pallas_call(
        kernel,
        grid=(B_pad // TILE_B,),
        in_specs=[
            pl.BlockSpec(memory_space=pltpu.MemorySpace.SMEM),        # alpha
            pl.BlockSpec((TILE_B, E), lambda i: (i, 0)),              # x tile (bf16)
            pl.BlockSpec((E, D1), lambda i: (0, 0)),                  # w1 (VMEM-resident)
            pl.BlockSpec((1, D1), lambda i: (0, 0)),                  # b1
            pl.BlockSpec((D1, D2), lambda i: (0, 0)),                 # w2
            pl.BlockSpec((1, D2), lambda i: (0, 0)),                  # b2
            pl.BlockSpec((D2, Hp), lambda i: (0, 0)),                 # w3
            pl.BlockSpec((1, Hp), lambda i: (0, 0)),                  # b3
        ],
        out_specs=pl.BlockSpec((TILE_B, Hp), lambda i: (i, 0)),
        out_shape=jax.ShapeDtypeStruct((B_pad, Hp), jnp.float32),
        compiler_params=pltpu.CompilerParams(
            dimension_semantics=("parallel",)),
    )(alpha_arr, x, hp["w1"], hp["b1"], hp["w2"], hp["b2"], hp["w3"], hp["b3"])
    return out[:B, :hash_dim]


@functools.partial(jax.jit, static_argnames=("num_clusters",))
def classifier_forward(embeddings, wc, bc, *, num_clusters):
    """Linear(E, num_clusters) on its own (no hash MLP). Returns (B, C) logits."""
    x = embeddings.astype(jnp.bfloat16)
    B, E = x.shape
    Cp = wc.shape[1]

    TILE_B = _batch_tile(B)
    B_pad = _round_up(B, TILE_B)
    if B_pad != B:
        x = jnp.pad(x, ((0, B_pad - B), (0, 0)))

    out = pl.pallas_call(
        _classifier_kernel,
        grid=(B_pad // TILE_B,),
        in_specs=[
            pl.BlockSpec((TILE_B, E), lambda i: (i, 0)),
            pl.BlockSpec((E, Cp), lambda i: (0, 0)),
            pl.BlockSpec((1, Cp), lambda i: (0, 0)),
        ],
        out_specs=pl.BlockSpec((TILE_B, Cp), lambda i: (i, 0)),
        out_shape=jax.ShapeDtypeStruct((B_pad, Cp), jnp.float32),
        compiler_params=pltpu.CompilerParams(
            dimension_semantics=("parallel",)),
    )(x, wc, bc)
    return out[:B, :num_clusters]


@functools.partial(jax.jit,
                   static_argnames=("apply_tanh", "hash_dim", "num_clusters"))
def fused_hash_classify_forward(embeddings, hp, wc, bc, alpha, *,
                                apply_tanh, hash_dim, num_clusters):
    """CoSHC retrieval path: (hash, cluster_logits) with x read from HBM once."""
    x = embeddings.astype(jnp.bfloat16)
    B, E = x.shape
    D1 = hp["w1"].shape[1]
    D2 = hp["w2"].shape[1]
    Hp = hp["w3"].shape[1]
    Cp = wc.shape[1]

    TILE_B = _batch_tile(B)
    B_pad = _round_up(B, TILE_B)
    if B_pad != B:
        x = jnp.pad(x, ((0, B_pad - B), (0, 0)))
    alpha_arr = jnp.asarray(alpha, jnp.float32).reshape(1, 1)

    kernel = functools.partial(_fused_hash_classify_kernel, bool(apply_tanh))
    hash_out, logits_out = pl.pallas_call(
        kernel,
        grid=(B_pad // TILE_B,),
        in_specs=[
            pl.BlockSpec(memory_space=pltpu.MemorySpace.SMEM),        # alpha
            pl.BlockSpec((TILE_B, E), lambda i: (i, 0)),              # x tile
            pl.BlockSpec((E, D1), lambda i: (0, 0)),
            pl.BlockSpec((1, D1), lambda i: (0, 0)),
            pl.BlockSpec((D1, D2), lambda i: (0, 0)),
            pl.BlockSpec((1, D2), lambda i: (0, 0)),
            pl.BlockSpec((D2, Hp), lambda i: (0, 0)),
            pl.BlockSpec((1, Hp), lambda i: (0, 0)),
            pl.BlockSpec((E, Cp), lambda i: (0, 0)),                  # wc
            pl.BlockSpec((1, Cp), lambda i: (0, 0)),                  # bc
        ],
        out_specs=(
            pl.BlockSpec((TILE_B, Hp), lambda i: (i, 0)),
            pl.BlockSpec((TILE_B, Cp), lambda i: (i, 0)),
        ),
        out_shape=(
            jax.ShapeDtypeStruct((B_pad, Hp), jnp.float32),
            jax.ShapeDtypeStruct((B_pad, Cp), jnp.float32),
        ),
        compiler_params=pltpu.CompilerParams(
            dimension_semantics=("parallel",)),
    )(alpha_arr, x, hp["w1"], hp["b1"], hp["w2"], hp["b2"], hp["w3"], hp["b3"],
      wc, bc)
    return hash_out[:B, :hash_dim], logits_out[:B, :num_clusters]


# -----------------------------------------------------------------------------
# Parameter construction (deterministic, synthetic — no checkpoint loading) and
# one-time kernel-ready preparation (bf16 casts + lane padding, hoisted to init).
# -----------------------------------------------------------------------------
def make_hash_head_params(key, embed_dim, hash_dim, scale=0.05):
    ks = jax.random.split(key, 6)

    def lin(kw, kb, fan_in, fan_out):
        w = scale * jax.random.normal(kw, (fan_in, fan_out), dtype=jnp.float32)
        b = scale * jax.random.normal(kb, (1, fan_out), dtype=jnp.float32)
        return w, b

    w1, b1 = lin(ks[0], ks[1], embed_dim, 512)
    w2, b2 = lin(ks[2], ks[3], 512, 512)
    w3, b3 = lin(ks[4], ks[5], 512, hash_dim)
    return dict(w1=w1, b1=b1, w2=w2, b2=b2, w3=w3, b3=b3)


def make_classifier_params(key, embed_dim, num_clusters, scale=0.05):
    kw, kb = jax.random.split(key)
    wc = scale * jax.random.normal(kw, (embed_dim, num_clusters), dtype=jnp.float32)
    bc = scale * jax.random.normal(kb, (1, num_clusters), dtype=jnp.float32)
    return wc, bc


def _prep_hash_params(p):
    """One-time: cast matmul weights to bf16, pad the final (H) dim to a 128 multiple."""
    H = p["w3"].shape[1]
    Hp = _round_up(H, 128)
    return dict(
        w1=p["w1"].astype(jnp.bfloat16),
        b1=p["b1"].astype(jnp.float32),
        w2=p["w2"].astype(jnp.bfloat16),
        b2=p["b2"].astype(jnp.float32),
        w3=jnp.pad(p["w3"], ((0, 0), (0, Hp - H))).astype(jnp.bfloat16),
        b3=jnp.pad(p["b3"], ((0, 0), (0, Hp - H))).astype(jnp.float32),
    )


def _prep_classifier_params(wc, bc):
    """One-time: bf16 weights, lane-dense (128-multiple) output width."""
    C = wc.shape[1]
    Cp = _round_up(C, 128)
    wc_p = jnp.pad(wc, ((0, 0), (0, Cp - C))).astype(jnp.bfloat16)
    bc_p = jnp.pad(bc, ((0, 0), (0, Cp - C))).astype(jnp.float32)
    return wc_p, bc_p


class CoSHCModelPallas:
    """JAX/Pallas port of CoSHCModel.

    forward(code_inputs, nl_inputs) in PyTorch just delegates to base_model;
    here base_model is represented by a user-supplied embedding function.
    """

    def __init__(self, base_model_fn, embed_dim, hash_dim=128, num_clusters=10,
                 key=None):
        # TODO(synk): the real base_model (external fastText embedder) is not part of this
        # module; any callable producing (B, embed_dim) embeddings stands in for it here.
        self.base_model_fn = base_model_fn
        self.alpha = 1.0
        self.hash_dim = hash_dim
        self.num_clusters = num_clusters

        key = key if key is not None else jax.random.PRNGKey(0)
        kc, kn, kcls = jax.random.split(key, 3)
        # f32 "master" params (reference / potential training use).
        self.code_params = make_hash_head_params(kc, embed_dim, hash_dim)
        self.nl_params = make_hash_head_params(kn, embed_dim, hash_dim)
        self.classifier_params = make_classifier_params(kcls, embed_dim, num_clusters)
        # Kernel-ready copies: padded + bf16-cast ONCE here, not per call.
        self._code_prepped = _prep_hash_params(self.code_params)
        self._nl_prepped = _prep_hash_params(self.nl_params)
        self._cls_prepped = _prep_classifier_params(*self.classifier_params)

    def forward(self, code_inputs=None, nl_inputs=None):
        # Mirrors: return self.base_model(code_inputs=..., nl_inputs=...)
        return self.base_model_fn(code_inputs=code_inputs, nl_inputs=nl_inputs)

    def get_binary_hash(self, embeddings, is_code=True, apply_tanh=False):
        hp = self._code_prepped if is_code else self._nl_prepped
        return hash_head_forward(embeddings, hp, self.alpha,
                                 apply_tanh=bool(apply_tanh),
                                 hash_dim=self.hash_dim)

    def classify(self, embeddings):
        wc, bc = self._cls_prepped
        return classifier_forward(embeddings, wc, bc,
                                  num_clusters=self.num_clusters)

    def classify_and_hash(self, embeddings, is_code=True, apply_tanh=True):
        """Fused retrieval path: returns (hash, cluster_logits) with one HBM pass over x."""
        hp = self._code_prepped if is_code else self._nl_prepped
        wc, bc = self._cls_prepped
        return fused_hash_classify_forward(embeddings, hp, wc, bc, self.alpha,
                                           apply_tanh=bool(apply_tanh),
                                           hash_dim=self.hash_dim,
                                           num_clusters=self.num_clusters)


if __name__ == "__main__":
    # Small, module-consistent shapes: batch=8, embed_dim=32, hash_dim=128, clusters=10.
    B, E, H, C = 8, 32, 128, 10
    key = jax.random.PRNGKey(0)
    k_code, k_nl, k_params = jax.random.split(key, 3)

    # Synthetic "base_model" outputs (deterministic): (B, E) embeddings.
    code_emb = jax.random.normal(k_code, (B, E), dtype=jnp.float32)
    nl_emb = jax.random.normal(k_nl, (B, E), dtype=jnp.float32)

    def fake_base_model(code_inputs=None, nl_inputs=None):
        return code_inputs if code_inputs is not None else nl_inputs

    model = CoSHCModelPallas(fake_base_model, embed_dim=E, hash_dim=H,
                             num_clusters=C, key=k_params)

    # forward() delegation (identity-style base model here).
    fwd_out = model.forward(code_inputs=code_emb)

    # Pallas hot paths.
    code_hash_tanh = model.get_binary_hash(code_emb, is_code=True, apply_tanh=True)
    code_hash_sign = model.get_binary_hash(code_emb, is_code=True, apply_tanh=False)
    nl_hash_sign = model.get_binary_hash(nl_emb, is_code=False, apply_tanh=False)
    logits = model.classify(code_emb)
    fused_hash, fused_logits = model.classify_and_hash(code_emb, is_code=True,
                                                       apply_tanh=True)

    for x in (fwd_out, code_hash_tanh, code_hash_sign, nl_hash_sign, logits,
              fused_hash, fused_logits):
        jax.block_until_ready(x)

    # Sanity checks against a pure-JAX f32 reference (kernels use bf16 matmul
    # operands with f32 accumulation, so tolerances are relaxed accordingly).
    p = model.code_params
    h = jnp.tanh(code_emb @ p["w1"] + p["b1"])
    h = jnp.tanh(h @ p["w2"] + p["b2"])
    h3_ref = h @ p["w3"] + p["b3"]
    wc_f32, bc_f32 = model.classifier_params

    assert code_hash_tanh.shape == (B, H) and logits.shape == (B, C)
    assert jnp.allclose(code_hash_tanh, jnp.tanh(model.alpha * h3_ref), atol=3e-2)
    # sign: values must be in {-1, 0, +1}; allow rare flips for |h3| ~ bf16 rounding error.
    assert bool(jnp.all(jnp.isin(code_hash_sign, jnp.array([-1.0, 0.0, 1.0]))))
    agree = jnp.mean((code_hash_sign == jnp.sign(h3_ref)).astype(jnp.float32))
    assert float(agree) > 0.97
    assert jnp.allclose(logits, code_emb @ wc_f32 + bc_f32, atol=2e-2)
    # Fused path must match the standalone kernels.
    assert jnp.allclose(fused_hash, code_hash_tanh, atol=1e-5)
    assert jnp.allclose(fused_logits, logits, atol=1e-5)

    print("KERNEL_OK")
</pallas_src>

<mosaic_0001>
module attributes {stable_mosaic.version = 11 : i64} {
  func.func @_hash_head_kernel(%arg0: i32, %arg1: memref<1x1xf32, #tpu.memory_space<smem>>, %arg2: memref<8x32xbf16, #tpu.memory_space<vmem>>, %arg3: memref<32x512xbf16, #tpu.memory_space<vmem>>, %arg4: memref<1x512xf32, #tpu.memory_space<vmem>>, %arg5: memref<512x512xbf16, #tpu.memory_space<vmem>>, %arg6: memref<1x512xf32, #tpu.memory_space<vmem>>, %arg7: memref<512x128xbf16, #tpu.memory_space<vmem>>, %arg8: memref<1x128xf32, #tpu.memory_space<vmem>>, %arg9: memref<8x128xf32, #tpu.memory_space<vmem>>) attributes {dimension_semantics = [#tpu.dimension_semantics<parallel>], iteration_bounds = array<i64: 1>, scalar_prefetch = 0 : i64, scratch_operands = 0 : i64, tpu.core_type = #tpu.core_type<tc>, window_params = [{transform_indices = @transform_0, window_bounds = array<i64: 1, 1>}, {transform_indices = @transform_1, window_bounds = array<i64: 8, 32>}, {pipeline_mode = #tpu.pipeline_mode<synchronous>, transform_indices = @transform_2, window_bounds = array<i64: 32, 512>}, {pipeline_mode = #tpu.pipeline_mode<synchronous>, transform_indices = @transform_3, window_bounds = array<i64: 1, 512>}, {pipeline_mode = #tpu.pipeline_mode<synchronous>, transform_indices = @transform_4, window_bounds = array<i64: 512, 512>}, {pipeline_mode = #tpu.pipeline_mode<synchronous>, transform_indices = @transform_5, window_bounds = array<i64: 1, 512>}, {pipeline_mode = #tpu.pipeline_mode<synchronous>, transform_indices = @transform_6, window_bounds = array<i64: 512, 128>}, {pipeline_mode = #tpu.pipeline_mode<synchronous>, transform_indices = @transform_7, window_bounds = array<i64: 1, 128>}, {transform_indices = @transform_8, window_bounds = array<i64: 8, 128>}]} {
    %c0 = arith.constant 0 : index
    %c0_0 = arith.constant 0 : index
    %0 = vector.load %arg2[%c0, %c0_0] : memref<8x32xbf16, #tpu.memory_space<vmem>>, vector<8x32xbf16>
    %c0_1 = arith.constant 0 : index
    %c0_2 = arith.constant 0 : index
    %1 = vector.load %arg3[%c0_1, %c0_2] : memref<32x512xbf16, #tpu.memory_space<vmem>>, vector<32x512xbf16>
    %cst = arith.constant dense<0.000000e+00> : vector<8x512xf32>
    %2 = tpu.matmul %0, %1, %cst {dimension_numbers = #tpu.dot_dimension_numbers<[1], [0], [0], [1], [0, 0, 1, 1], [], []>} : vector<8x32xbf16>, vector<32x512xbf16>, vector<8x512xf32> -> vector<8x512xf32>
    %c0_3 = arith.constant 0 : index
    %c0_4 = arith.constant 0 : index
    %3 = vector.load %arg4[%c0_3, %c0_4] : memref<1x512xf32, #tpu.memory_space<vmem>>, vector<1x512xf32>
    %4 = vector.broadcast %3 : vector<1x512xf32> to vector<8x512xf32>
    %5 = arith.addf %2, %4 : vector<8x512xf32>
    %6 = math.tanh %5 : vector<8x512xf32>
    %7 = arith.truncf %6 : vector<8x512xf32> to vector<8x512xbf16>
    %c0_5 = arith.constant 0 : index
    %c0_6 = arith.constant 0 : index
    %8 = vector.load %arg5[%c0_5, %c0_6] : memref<512x512xbf16, #tpu.memory_space<vmem>>, vector<512x512xbf16>
    %cst_7 = arith.constant dense<0.000000e+00> : vector<8x512xf32>
    %9 = tpu.matmul %7, %8, %cst_7 {dimension_numbers = #tpu.dot_dimension_numbers<[1], [0], [0], [1], [0, 0, 1, 1], [], []>} : vector<8x512xbf16>, vector<512x512xbf16>, vector<8x512xf32> -> vector<8x512xf32>
    %c0_8 = arith.constant 0 : index
    %c0_9 = arith.constant 0 : index
    %10 = vector.load %arg6[%c0_8, %c0_9] : memref<1x512xf32, #tpu.memory_space<vmem>>, vector<1x512xf32>
    %11 = vector.broadcast %10 : vector<1x512xf32> to vector<8x512xf32>
    %12 = arith.addf %9, %11 : vector<8x512xf32>
    %13 = math.tanh %12 : vector<8x512xf32>
    %14 = arith.truncf %13 : vector<8x512xf32> to vector<8x512xbf16>
    %c0_10 = arith.constant 0 : index
    %c0_11 = arith.constant 0 : index
    %15 = vector.load %arg7[%c0_10, %c0_11] : memref<512x128xbf16, #tpu.memory_space<vmem>>, vector<512x128xbf16>
    %cst_12 = arith.constant dense<0.000000e+00> : vector<8x128xf32>
    %16 = tpu.matmul %14, %15, %cst_12 {dimension_numbers = #tpu.dot_dimension_numbers<[1], [0], [0], [1], [0, 0, 1, 1], [], []>} : vector<8x512xbf16>, vector<512x128xbf16>, vector<8x128xf32> -> vector<8x128xf32>
    %c0_13 = arith.constant 0 : index
    %c0_14 = arith.constant 0 : index
    %17 = vector.load %arg8[%c0_13, %c0_14] : memref<1x128xf32, #tpu.memory_space<vmem>>, vector<1x128xf32>
    %18 = vector.broadcast %17 : vector<1x128xf32> to vector<8x128xf32>
    %19 = arith.addf %16, %18 : vector<8x128xf32>
    %c0_15 = arith.constant 0 : index
    %c0_16 = arith.constant 0 : index
    %20 = memref.load %arg1[%c0_15, %c0_16] : memref<1x1xf32, #tpu.memory_space<smem>>
    %21 = vector.broadcast %20 : f32 to vector<8x128xf32>
    %22 = arith.mulf %21, %19 : vector<8x128xf32>
    %23 = math.tanh %22 : vector<8x128xf32>
    %c0_17 = arith.constant 0 : index
    %c0_18 = arith.constant 0 : index
    %24 = vector.load %arg9[%c0_17, %c0_18] : memref<8x128xf32, #tpu.memory_space<vmem>>, vector<8x128xf32>
    tpu.vector_store %arg9[%c0_17, %c0_18], %23 {strides = array<i32>} : memref<8x128xf32, #tpu.memory_space<vmem>>, vector<8x128xf32>,
    return
  }
  func.func @transform_0(%arg0: i32) -> (i32, i32) {
    %c0_i32 = arith.constant 0 : i32
    %c0_i32_0 = arith.constant 0 : i32
    %c0_i32_1 = arith.constant 0 : i32
    return %c0_i32, %c0_i32_0 : i32, i32
  }
  func.func @transform_1(%arg0: i32) -> (i32, i32) {
    %c0_i32 = arith.constant 0 : i32
    %c0_i32_0 = arith.constant 0 : i32
    return %arg0, %c0_i32 : i32, i32
  }
  func.func @transform_2(%arg0: i32) -> (i32, i32) {
    %c0_i32 = arith.constant 0 : i32
    %c0_i32_0 = arith.constant 0 : i32
    %c0_i32_1 = arith.constant 0 : i32
    return %c0_i32, %c0_i32_0 : i32, i32
  }
  func.func @transform_3(%arg0: i32) -> (i32, i32) {
    %c0_i32 = arith.constant 0 : i32
    %c0_i32_0 = arith.constant 0 : i32
    %c0_i32_1 = arith.constant 0 : i32
    return %c0_i32, %c0_i32_0 : i32, i32
  }
  func.func @transform_4(%arg0: i32) -> (i32, i32) {
    %c0_i32 = arith.constant 0 : i32
    %c0_i32_0 = arith.constant 0 : i32
    %c0_i32_1 = arith.constant 0 : i32
    return %c0_i32, %c0_i32_0 : i32, i32
  }
  func.func @transform_5(%arg0: i32) -> (i32, i32) {
    %c0_i32 = arith.constant 0 : i32
    %c0_i32_0 = arith.constant 0 : i32
    %c0_i32_1 = arith.constant 0 : i32
    return %c0_i32, %c0_i32_0 : i32, i32
  }
  func.func @transform_6(%arg0: i32) -> (i32, i32) {
    %c0_i32 = arith.constant 0 : i32
    %c0_i32_0 = arith.constant 0 : i32
    %c0_i32_1 = arith.constant 0 : i32
    return %c0_i32, %c0_i32_0 : i32, i32
  }
  func.func @transform_7(%arg0: i32) -> (i32, i32) {
    %c0_i32 = arith.constant 0 : i32
    %c0_i32_0 = arith.constant 0 : i32
    %c0_i32_1 = arith.constant 0 : i32
    return %c0_i32, %c0_i32_0 : i32, i32
  }
  func.func @transform_8(%arg0: i32) -> (i32, i32) {
    %c0_i32 = arith.constant 0 : i32
    %c0_i32_0 = arith.constant 0 : i32
    return %arg0, %c0_i32 : i32, i32
  }
}

</mosaic_0001>

<llo_original>
// kernel: hash_head_forward.1
$region0: #{hash_head_forward.1}
  #allocation0 [shape = 'u32[]', space=smem, size = 0x4, offset = 0x4, fixed_abs, tag = 'smem constant byte address 0x4 - core index']
  #allocation1 [shape = 'u32[72,128]{1,0:T(1,128)}', space=vmem, size = 0x9000, scoped, tag = 'internal scratch']
  #allocation2 [shape = 'f32[1,1]{1,0:T(1,128)S(6)}', space=smem, size = 0x200, scoped, tag = 'scoped memory for hash_head_forward.1']
  %s0 = inlined_call_operand.<no memory space> [shape: f32[1,1], index: 0, kind: input, shape index: {}]
  %s1 = inlined_call_operand.vmem [shape: bf16[8,32], index: 1, kind: input, shape index: {}]
  %s2 = inlined_call_operand.hbm [shape: bf16[32,512], index: 2, kind: input, shape index: {}]
  %s3 = inlined_call_operand.vmem [shape: f32[1,512], index: 3, kind: input, shape index: {}]
  %s4 = inlined_call_operand.hbm [shape: bf16[512,512], index: 4, kind: input, shape index: {}]
  %s5 = inlined_call_operand.vmem [shape: f32[1,512], index: 5, kind: input, shape index: {}]
  %s6 = inlined_call_operand.hbm [shape: bf16[512,128], index: 6, kind: input, shape index: {}]
  %s7 = inlined_call_operand.vmem [shape: f32[1,128], index: 7, kind: input, shape index: {}]
  %s8 = inlined_call_operand.hbm [shape: f32[8,128], index: 8, kind: output, shape index: {}]
  %s9 = sld [smem:[#allocation0]]
  $region54: #{hash_head_forward.1} parent=0
    _
  %s11 = ssub.s32 1, %s9
  %s12 = scalar_select 0, %s11, %s9
  %13 = sst [smem:[#allocation2]] %s0
  $region1: #{hash_head_forward.1} parent=0
    #allocation3 [shape = 'u8[32768]{0}', space=vmem, size = 0x8000, scoped, tag = 'input window, operand 2, single buffered']
    #allocation4 [shape = 's32[1]{0}', space=sflag, size = 0x4, scoped, tag = 'scoped memory for hash_head_forward.1']
    #allocation5 [shape = 's32[1]{0}', space=sflag, size = 0x4, scoped, tag = 'scoped memory for hash_head_forward.1']
    #allocation6 [shape = 'u8[524288]{0}', space=vmem, size = 0x80000, scoped, tag = 'input window, operand 4, single buffered']
    #allocation7 [shape = 's32[1]{0}', space=sflag, size = 0x4, scoped, tag = 'scoped memory for hash_head_forward.1']
    #allocation8 [shape = 'u8[131072]{0}', space=vmem, size = 0x20000, scoped, tag = 'input window, operand 6, single buffered']
    #allocation9 [shape = 'u8[4096]{0}', space=vmem, size = 0x1000, scoped, tag = 'output window, operand 0, single buffered']
    %14 = vsyncpa [#allocation4], 0
    %15 = vsyncpa [#allocation7], 0
    %16 = vsyncpa [#allocation5], 0
    // Predicated region
    $region2: #{hash_head_forward.1} parent=1 // pred_check
      _
    $region3: #{hash_head_forward.1} parent=1 // pred_check_branch
      %18 = sbr.rel (0) target = $region5
    $region4: #{hash_head_forward.1} parent=1 // pred_region
      _
    $region5: #{hash_head_forward.1} parent=1 // pred_fallthru
      _
    // Predicated region
    $region6: #{hash_head_forward.1} parent=1 // pred_check
      _
    $region7: #{hash_head_forward.1} parent=1 // pred_check_branch
      %20 = sbr.rel (0) target = $region9
    $region8: #{hash_head_forward.1} parent=1 // pred_region
      _
    $region9: #{hash_head_forward.1} parent=1 // pred_fallthru
      _
    // Predicated region
    $region10: #{hash_head_forward.1} parent=1 // pred_check
      _
    $region11: #{hash_head_forward.1} parent=1 // pred_check_branch
      %22 = sbr.rel (0) target = $region13
    $region12: #{hash_head_forward.1} parent=1 // pred_region
      %24 = vsyncadd [#allocation4], 0
      %s25 = sshll.u32 %s2, 4
      %s26 = int_to_ptr.hbm [resolvable:$true] %s25
      %s27 = sshll.u32 [#allocation3], 4
      %s28 = int_to_ptr.vmem [resolvable:$true] %s27
      %33 = dma.hbm_to_vmem [thread:$0]  %s26, 1024, %s28, [#allocation4], 256, 256, 16
    $region13: #{hash_head_forward.1} parent=1 // pred_fallthru
      _
    // Predicated region
    $region14: #{hash_head_forward.1} parent=1 // pred_check
      _
    $region15: #{hash_head_forward.1} parent=1 // pred_check_branch
      %35 = sbr.rel (0) target = $region17
    $region16: #{hash_head_forward.1} parent=1 // pred_region
      _
    $region17: #{hash_head_forward.1} parent=1 // pred_fallthru
      _
    // Predicated region
    $region18: #{hash_head_forward.1} parent=1 // pred_check
      _
    $region19: #{hash_head_forward.1} parent=1 // pred_check_branch
      %37 = sbr.rel (0) target = $region21
    $region20: #{hash_head_forward.1} parent=1 // pred_region
      %39 = vsyncadd [#allocation7], 0
      %s40 = sshll.u32 %s4, 4
      %s41 = int_to_ptr.hbm [resolvable:$true] %s40
      %s42 = sshll.u32 [#allocation6], 4
      %s43 = int_to_ptr.vmem [resolvable:$true] %s42
      %48 = dma.hbm_to_vmem [thread:$0]  %s41, 16384, %s43, [#allocation7], 256, 256, 16
    $region21: #{hash_head_forward.1} parent=1 // pred_fallthru
      _
    // Predicated region
    $region22: #{hash_head_forward.1} parent=1 // pred_check
      _
    $region23: #{hash_head_forward.1} parent=1 // pred_check_branch
      %50 = sbr.rel (0) target = $region25
    $region24: #{hash_head_forward.1} parent=1 // pred_region
      _
    $region25: #{hash_head_forward.1} parent=1 // pred_fallthru
      _
    // Predicated region
    $region26: #{hash_head_forward.1} parent=1 // pred_check
      _
    $region27: #{hash_head_forward.1} parent=1 // pred_check_branch
      %52 = sbr.rel (0) target = $region29
    $region28: #{hash_head_forward.1} parent=1 // pred_region
      %54 = vsyncadd [#allocation7], 0
      %s55 = sshll.u32 %s6, 4
      %s56 = int_to_ptr.hbm [resolvable:$true] %s55
      %s57 = sshll.u32 [#allocation8], 4
      %s58 = int_to_ptr.vmem [resolvable:$true] %s57
      %63 = dma.hbm_to_vmem [thread:$0]  %s56, 4096, %s58, [#allocation7], 64, 64, 4
    $region29: #{hash_head_forward.1} parent=1 // pred_fallthru
      _
    // Predicated region
    $region30: #{hash_head_forward.1} parent=1 // pred_check
      _
    $region31: #{hash_head_forward.1} parent=1 // pred_check_branch
      %65 = sbr.rel (0) target = $region33
    $region32: #{hash_head_forward.1} parent=1 // pred_region
      _
    $region33: #{hash_head_forward.1} parent=1 // pred_fallthru
      _
    // Predicated region
    $region34: #{hash_head_forward.1} parent=1 // pred_check
      _
    $region35: #{hash_head_forward.1} parent=1 // pred_check_branch
      %67 = sbr.rel (0) target = $region37
    $region36: #{hash_head_forward.1} parent=1 // pred_region
      %69 = dma.done [#allocation4], 1024
    $region37: #{hash_head_forward.1} parent=1 // pred_fallthru
      _
    // Predicated region
    $region38: #{hash_head_forward.1} parent=1 // pred_check
      _
    $region39: #{hash_head_forward.1} parent=1 // pred_check_branch
      %71 = sbr.rel (0) target = $region41
    $region40: #{hash_head_forward.1} parent=1 // pred_region
      %73 = dma.done [#allocation7], 16384
    $region41: #{hash_head_forward.1} parent=1 // pred_fallthru
      _
    // Predicated region
    $region42: #{hash_head_forward.1} parent=1 // pred_check
      _
    $region43: #{hash_head_forward.1} parent=1 // pred_check_branch
      %75 = sbr.rel (0) target = $region45
    $region44: #{hash_head_forward.1} parent=1 // pred_region
      %77 = dma.done [#allocation7], 4096
    $region45: #{hash_head_forward.1} parent=1 // pred_fallthru
      _
    %v79 = vld [vmem:[%s1] sm:$0xf]
    %v80 = vld [vmem:[#allocation3] sm:$0xff]
    %v81 = vld [vmem:[#allocation3 + $0x8] sm:$0xff]
    %v82 = vld [vmem:[#allocation3 + $0x10] sm:$0xff]
    %v83 = vld [vmem:[#allocation3 + $0x18] sm:$0xff]
    %v84 = vld [vmem:[#allocation3 + $0x20] sm:$0xff]
    %v85 = vld [vmem:[#allocation3 + $0x28] sm:$0xff]
    %v86 = vld [vmem:[#allocation3 + $0x30] sm:$0xff]
    %v87 = vld [vmem:[#allocation3 + $0x38] sm:$0xff]
    %v88 = vld [vmem:[%s3] sm:$0xf]
    %v90 = vperm.slane %v88, 0
    %v91 = vperm.slane %v88, 1
    %v92 = vperm.slane %v88, 2
    %v93 = vperm.slane %v88, 3
    %v106 = vunpack.c.l.b16 %v80
    %v107 = vunpack.c.h.b16 %v80
    %v108 = vunpack.c.l.b16 %v81
    %v109 = vunpack.c.h.b16 %v81
    %v110 = vunpack.c.l.b16 %v82
    %v111 = vunpack.c.h.b16 %v82
    %v112 = vunpack.c.l.b16 %v83
    %v113 = vunpack.c.h.b16 %v83
    %v114 = vunpack.c.l.b16 %v84
    %v115 = vunpack.c.h.b16 %v84
    %v116 = vunpack.c.l.b16 %v85
    %v117 = vunpack.c.h.b16 %v85
    %v118 = vunpack.c.l.b16 %v86
    %v119 = vunpack.c.h.b16 %v86
    %v120 = vunpack.c.l.b16 %v87
    %v121 = vunpack.c.h.b16 %v87
    %v122 = vpack.c.b16 %v110, %v106
    %v123 = vpack.c.b16 %v111, %v107
    %v124 = vpack.c.b16 %v112, %v108
    %v125 = vpack.c.b16 %v113, %v109
    %v126 = vpack.c.b16 %v118, %v114
    %v127 = vpack.c.b16 %v119, %v115
    %v128 = vpack.c.b16 %v120, %v116
    %v129 = vpack.c.b16 %v121, %v117
    %vm138 = vcmask 261120
    %v140 = vsel %vm138, %v79, 0
    %142 = vmatpush.bf16.msra.mxu0 0
    %143 = vmatpush.bf16.msra.mxu0 0
    %144 = vmatpush.bf16.msra.mxu0 0
    %145 = vmatpush.bf16.msra.mxu0 0
    %146 = vmatpush.bf16.msra.mxu0 0
    %147 = vmatpush.bf16.msra.mxu0 0
    %148 = vmatpush.bf16.msra.mxu0 %v126
    %149 = vmatpush.bf16.msra.mxu0 %v122
    %150 = vmatmul.bf16.gmra.mxu0 %v140
    %v151 = vpop.f32.mrf.mxu0
    %v152 = vadd.f32 %v90, %v151
    %v153 = vpop.f32.mrf.mxu0
    %154 = vdwg.mxu0
    %155 = vmatpush.bf16.msra.mxu0 0
    %156 = vmatpush.bf16.msra.mxu0 0
    %157 = vmatpush.bf16.msra.mxu0 0
    %158 = vmatpush.bf16.msra.mxu0 0
    %159 = vmatpush.bf16.msra.mxu0 0
    %160 = vmatpush.bf16.msra.mxu0 0
    %161 = vmatpush.bf16.msra.mxu0 %v127
    %162 = vmatpush.bf16.msra.mxu0 %v123
    %163 = vmatmul.bf16.gmra.mxu0 %v140
    %v164 = vpop.f32.mrf.mxu0
    %v165 = vadd.f32 %v91, %v164
    %v166 = vpop.f32.mrf.mxu0
    %167 = vdwg.mxu0
    %168 = vmatpush.bf16.msra.mxu0 0
    %169 = vmatpush.bf16.msra.mxu0 0
    %170 = vmatpush.bf16.msra.mxu0 0
    %171 = vmatpush.bf16.msra.mxu0 0
    %172 = vmatpush.bf16.msra.mxu0 0
    %173 = vmatpush.bf16.msra.mxu0 0
    %174 = vmatpush.bf16.msra.mxu0 %v128
    %175 = vmatpush.bf16.msra.mxu0 %v124
    %176 = vmatmul.bf16.gmra.mxu0 %v140
    %v177 = vpop.f32.mrf.mxu0
    %v178 = vadd.f32 %v92, %v177
    %v179 = vpop.f32.mrf.mxu0
    %180 = vdwg.mxu0
    %181 = vmatpush.bf16.msra.mxu0 0
    %182 = vmatpush.bf16.msra.mxu0 0
    %183 = vmatpush.bf16.msra.mxu0 0
    %184 = vmatpush.bf16.msra.mxu0 0
    %185 = vmatpush.bf16.msra.mxu0 0
    %186 = vmatpush.bf16.msra.mxu0 0
    %187 = vmatpush.bf16.msra.mxu0 %v129
    %188 = vmatpush.bf16.msra.mxu0 %v125
    %189 = vmatmul.bf16.gmra.mxu0 %v140
    %v190 = vpop.f32.mrf.mxu0
    %v191 = vadd.f32 %v93, %v190
    %v192 = vpop.f32.mrf.mxu0
    %193 = vdwg.mxu0
    %v194 = vtanh.pop %v152
    %v195 = vtanh.pop %v165
    %v196 = vtanh.pop %v178
    %v197 = vtanh.pop %v191
    %v198 = vpack.c.bf16 %v194, %v194
    %v199 = vpack.c.bf16 %v195, %v195
    %v200 = vpack.c.bf16 %v196, %v196
    %v201 = vpack.c.bf16 %v197, %v197
    %v202 = vld [vmem:[#allocation6] sm:$0xff]
    %v203 = vld [vmem:[#allocation6 + $0x8] sm:$0xff]
    %v204 = vld [vmem:[#allocation6 + $0x10] sm:$0xff]
    %v205 = vld [vmem:[#allocation6 + $0x18] sm:$0xff]
    %v206 = vld [vmem:[#allocation6 + $0x20] sm:$0xff]
    %v207 = vld [vmem:[#allocation6 + $0x28] sm:$0xff]
    %v208 = vld [vmem:[#allocation6 + $0x30] sm:$0xff]
    %v209 = vld [vmem:[#allocation6 + $0x38] sm:$0xff]
    %v210 = vld [vmem:[#allocation6 + $0x40] sm:$0xff]
    %v211 = vld [vmem:[#allocation6 + $0x48] sm:$0xff]
    %v212 = vld [vmem:[#allocation6 + $0x50] sm:$0xff]
    %v213 = vld [vmem:[#allocation6 + $0x58] sm:$0xff]
    %v214 = vld [vmem:[#allocation6 + $0x60] sm:$0xff]
    %v215 = vld [vmem:[#allocation6 + $0x68] sm:$0xff]
    %v216 = vld [vmem:[#allocation6 + $0x70] sm:$0xff]
    %v217 = vld [vmem:[#allocation6 + $0x78] sm:$0xff]
    %v218 = vld [vmem:[#allocation6 + $0x80] sm:$0xff]
    %v219 = vld [vmem:[#allocation6 + $0x88] sm:$0xff]
    %v220 = vld [vmem:[#allocation6 + $0x90] sm:$0xff]
    %v221 = vld [vmem:[#allocation6 + $0x98] sm:$0xff]
    %v222 = vld [vmem:[#allocation6 + $0xa0] sm:$0xff]
    %v223 = vld [vmem:[#allocation6 + $0xa8] sm:$0xff]
    %v224 = vld [vmem:[#allocation6 + $0xb0] sm:$0xff]
    %v225 = vld [vmem:[#allocation6 + $0xb8] sm:$0xff]
    %v226 = vld [vmem:[#allocation6 + $0xc0] sm:$0xff]
    %v227 = vld [vmem:[#allocation6 + $0xc8] sm:$0xff]
    %v228 = vld [vmem:[#allocation6 + $0xd0] sm:$0xff]
    %v229 = vld [vmem:[#allocation6 + $0xd8] sm:$0xff]
    %v230 = vld [vmem:[#allocation6 + $0xe0] sm:$0xff]
    %v231 = vld [vmem:[#allocation6 + $0xe8] sm:$0xff]
    %v232 = vld [vmem:[#allocation6 + $0xf0] sm:$0xff]
    %v233 = vld [vmem:[#allocation6 + $0xf8] sm:$0xff]
    %v234 = vld [vmem:[#allocation6 + $0x100] sm:$0xff]
    %v235 = vld [vmem:[#allocation6 + $0x108] sm:$0xff]
    %v236 = vld [vmem:[#allocation6 + $0x110] sm:$0xff]
    %v237 = vld [vmem:[#allocation6 + $0x118] sm:$0xff]
    %v238 = vld [vmem:[#allocation6 + $0x120] sm:$0xff]
    %v239 = vld [vmem:[#allocation6 + $0x128] sm:$0xff]
    %v240 = vld [vmem:[#allocation6 + $0x130] sm:$0xff]
    %v241 = vld [vmem:[#allocation6 + $0x138] sm:$0xff]
    %v242 = vld [vmem:[#allocation6 + $0x140] sm:$0xff]
    %v243 = vld [vmem:[#allocation6 + $0x148] sm:$0xff]
    %v244 = vld [vmem:[#allocation6 + $0x150] sm:$0xff]
    %v245 = vld [vmem:[#allocation6 + $0x158] sm:$0xff]
    %v246 = vld [vmem:[#allocation6 + $0x160] sm:$0xff]
    %v247 = vld [vmem:[#allocation6 + $0x168] sm:$0xff]
    %v248 = vld [vmem:[#allocation6 + $0x170] sm:$0xff]
    %v249 = vld [vmem:[#allocation6 + $0x178] sm:$0xff]
    %v250 = vld [vmem:[#allocation6 + $0x180] sm:$0xff]
    %v251 = vld [vmem:[#allocation6 + $0x188] sm:$0xff]
    %v252 = vld [vmem:[#allocation6 + $0x190] sm:$0xff]
    %v253 = vld [vmem:[#allocation6 + $0x198] sm:$0xff]
    %v254 = vld [vmem:[#allocation6 + $0x1a0] sm:$0xff]
    %v255 = vld [vmem:[#allocation6 + $0x1a8] sm:$0xff]
    %v256 = vld [vmem:[#allocation6 + $0x1b0] sm:$0xff]
    %v257 = vld [vmem:[#allocation6 + $0x1b8] sm:$0xff]
    %v258 = vld [vmem:[#allocation6 + $0x1c0] sm:$0xff]
    %v259 = vld [vmem:[#allocation6 + $0x1c8] sm:$0xff]
    %v260 = vld [vmem:[#allocation6 + $0x1d0] sm:$0xff]
    %v261 = vld [vmem:[#allocation6 + $0x1d8] sm:$0xff]
    %v262 = vld [vmem:[#allocation6 + $0x1e0] sm:$0xff]
    %v263 = vld [vmem:[#allocation6 + $0x1e8] sm:$0xff]
    %v264 = vld [vmem:[#allocation6 + $0x1f0] sm:$0xff]
    %v265 = vld [vmem:[#allocation6 + $0x1f8] sm:$0xff]
    %v266 = vld [vmem:[#allocation6 + $0x200] sm:$0xff]
    %v267 = vld [vmem:[#allocation6 + $0x208] sm:$0xff]
    %v268 = vld [vmem:[#allocation6 + $0x210] sm:$0xff]
    %v269 = vld [vmem:[#allocation6 + $0x218] sm:$0xff]
    %v270 = vld [vmem:[#allocation6 + $0x220] sm:$0xff]
    %v271 = vld [vmem:[#allocation6 + $0x228] sm:$0xff]
    %v272 = vld [vmem:[#allocation6 + $0x230] sm:$0xff]
    %v273 = vld [vmem:[#allocation6 + $0x238] sm:$0xff]
    %v274 = vld [vmem:[#allocation6 + $0x240] sm:$0xff]
    %v275 = vld [vmem:[#allocation6 + $0x248] sm:$0xff]
    %v276 = vld [vmem:[#allocation6 + $0x250] sm:$0xff]
    %v277 = vld [vmem:[#allocation6 + $0x258] sm:$0xff]
    %v278 = vld [vmem:[#allocation6 + $0x260] sm:$0xff]
    %v279 = vld [vmem:[#allocation6 + $0x268] sm:$0xff]
    %v280 = vld [vmem:[#allocation6 + $0x270] sm:$0xff]
    %v281 = vld [vmem:[#allocation6 + $0x278] sm:$0xff]
    %v282 = vld [vmem:[#allocation6 + $0x280] sm:$0xff]
    %v283 = vld [vmem:[#allocation6 + $0x288] sm:$0xff]
    %v284 = vld [vmem:[#allocation6 + $0x290] sm:$0xff]
    %v285 = vld [vmem:[#allocation6 + $0x298] sm:$0xff]
    %v286 = vld [vmem:[#allocation6 + $0x2a0] sm:$0xff]
    %v287 = vld [vmem:[#allocation6 + $0x2a8] sm:$0xff]
    %v288 = vld [vmem:[#allocation6 + $0x2b0] sm:$0xff]
    %v289 = vld [vmem:[#allocation6 + $0x2b8] sm:$0xff]
    %v290 = vld [vmem:[#allocation6 + $0x2c0] sm:$0xff]
    %v291 = vld [vmem:[#allocation6 + $0x2c8] sm:$0xff]
    %v292 = vld [vmem:[#allocation6 + $0x2d0] sm:$0xff]
    %v293 = vld [vmem:[#allocation6 + $0x2d8] sm:$0xff]
    %v294 = vld [vmem:[#allocation6 + $0x2e0] sm:$0xff]
    %v295 = vld [vmem:[#allocation6 + $0x2e8] sm:$0xff]
    %v296 = vld [vmem:[#allocation6 + $0x2f0] sm:$0xff]
    %v297 = vld [vmem:[#allocation6 + $0x2f8] sm:$0xff]
    %v298 = vld [vmem:[#allocation6 + $0x300] sm:$0xff]
    %v299 = vld [vmem:[#allocation6 + $0x308] sm:$0xff]
    %v300 = vld [vmem:[#allocation6 + $0x310] sm:$0xff]
    %v301 = vld [vmem:[#allocation6 + $0x318] sm:$0xff]
    %v302 = vld [vmem:[#allocation6 + $0x320] sm:$0xff]
    %v303 = vld [vmem:[#allocation6 + $0x328] sm:$0xff]
    %v304 = vld [vmem:[#allocation6 + $0x330] sm:$0xff]
    %v305 = vld [vmem:[#allocation6 + $0x338] sm:$0xff]
    %v306 = vld [vmem:[#allocation6 + $0x340] sm:$0xff]
    %v307 = vld [vmem:[#allocation6 + $0x348] sm:$0xff]
    %v308 = vld [vmem:[#allocation6 + $0x350] sm:$0xff]
    %v309 = vld [vmem:[#allocation6 + $0x358] sm:$0xff]
    %v310 = vld [vmem:[#allocation6 + $0x360] sm:$0xff]
    %v311 = vld [vmem:[#allocation6 + $0x368] sm:$0xff]
    %v312 = vld [vmem:[#allocation6 + $0x370] sm:$0xff]
    %v313 = vld [vmem:[#allocation6 + $0x378] sm:$0xff]
    %v314 = vld [vmem:[#allocation6 + $0x380] sm:$0xff]
    %v315 = vld [vmem:[#allocation6 + $0x388] sm:$0xff]
    %v316 = vld [vmem:[#allocation6 + $0x390] sm:$0xff]
    %v317 = vld [vmem:[#allocation6 + $0x398] sm:$0xff]
    %v318 = vld [vmem:[#allocation6 + $0x3a0] sm:$0xff]
    %v319 = vld [vmem:[#allocation6 + $0x3a8] sm:$0xff]
    %v320 = vld [vmem:[#allocation6 + $0x3b0] sm:$0xff]
    %v321 = vld [vmem:[#allocation6 + $0x3b8] sm:$0xff]
    %v322 = vld [vmem:[#allocation6 + $0x3c0] sm:$0xff]
    %v323 = vld [vmem:[#allocation6 + $0x3c8] sm:$0xff]
    %v324 = vld [vmem:[#allocation6 + $0x3d0] sm:$0xff]
    %v325 = vld [vmem:[#allocation6 + $0x3d8] sm:$0xff]
    %v326 = vld [vmem:[#allocation6 + $0x3e0] sm:$0xff]
    %v327 = vld [vmem:[#allocation6 + $0x3e8] sm:$0xff]
    %v328 = vld [vmem:[#allocation6 + $0x3f0] sm:$0xff]
    %v329 = vld [vmem:[#allocation6 + $0x3f8] sm:$0xff]
    %v330 = vld [vmem:[%s5] sm:$0xf]
    %v332 = vperm.slane %v330, 0
    %v333 = vperm.slane %v330, 1
    %v334 = vperm.slane %v330, 2
    %v335 = vperm.slane %v330, 3
    %v468 = vunpack.c.l.b16 %v202
    %v469 = vunpack.c.h.b16 %v202
    %v470 = vunpack.c.l.b16 %v203
    %v471 = vunpack.c.h.b16 %v203
    %v472 = vunpack.c.l.b16 %v204
    %v473 = vunpack.c.h.b16 %v204
    %v474 = vunpack.c.l.b16 %v205
    %v475 = vunpack.c.h.b16 %v205
    %v476 = vunpack.c.l.b16 %v206
    %v477 = vunpack.c.h.b16 %v206
    %v478 = vunpack.c.l.b16 %v207
    %v479 = vunpack.c.h.b16 %v207
    %v480 = vunpack.c.l.b16 %v208
    %v481 = vunpack.c.h.b16 %v208
    %v482 = vunpack.c.l.b16 %v209
    %v483 = vunpack.c.h.b16 %v209
    %v484 = vunpack.c.l.b16 %v210
    %v485 = vunpack.c.h.b16 %v210
    %v486 = vunpack.c.l.b16 %v211
    %v487 = vunpack.c.h.b16 %v211
    %v488 = vunpack.c.l.b16 %v212
    %v489 = vunpack.c.h.b16 %v212
    %v490 = vunpack.c.l.b16 %v213
    %v491 = vunpack.c.h.b16 %v213
    %v492 = vunpack.c.l.b16 %v214
    %v493 = vunpack.c.h.b16 %v214
    %v494 = vunpack.c.l.b16 %v215
    %v495 = vunpack.c.h.b16 %v215
    %v496 = vunpack.c.l.b16 %v216
    %v497 = vunpack.c.h.b16 %v216
    %v498 = vunpack.c.l.b16 %v217
    %v499 = vunpack.c.h.b16 %v217
    %v500 = vunpack.c.l.b16 %v218
    %v501 = vunpack.c.h.b16 %v218
    %v502 = vunpack.c.l.b16 %v219
    %v503 = vunpack.c.h.b16 %v219
    %v504 = vunpack.c.l.b16 %v220
    %v505 = vunpack.c.h.b16 %v220
    %v506 = vunpack.c.l.b16 %v221
    %v507 = vunpack.c.h.b16 %v221
    %v508 = vunpack.c.l.b16 %v222
    %v509 = vunpack.c.h.b16 %v222
    %v510 = vunpack.c.l.b16 %v223
    %v511 = vunpack.c.h.b16 %v223
    %v512 = vunpack.c.l.b16 %v224
    %v513 = vunpack.c.h.b16 %v224
    %v514 = vunpack.c.l.b16 %v225
    %v515 = vunpack.c.h.b16 %v225
    %v516 = vunpack.c.l.b16 %v226
    %v517 = vunpack.c.h.b16 %v226
    %v518 = vunpack.c.l.b16 %v227
    %v519 = vunpack.c.h.b16 %v227
    %v520 = vunpack.c.l.b16 %v228
    %v521 = vunpack.c.h.b16 %v228
    %v522 = vunpack.c.l.b16 %v229
    %v523 = vunpack.c.h.b16 %v229
    %v524 = vunpack.c.l.b16 %v230
    %v525 = vunpack.c.h.b16 %v230
    %v526 = vunpack.c.l.b16 %v231
    %v527 = vunpack.c.h.b16 %v231
    %v528 = vunpack.c.l.b16 %v232
    %v529 = vunpack.c.h.b16 %v232
    %v530 = vunpack.c.l.b16 %v233
    %v531 = vunpack.c.h.b16 %v233
    %v532 = vunpack.c.l.b16 %v234
    %v533 = vunpack.c.h.b16 %v234
    %v534 = vunpack.c.l.b16 %v235
    %v535 = vunpack.c.h.b16 %v235
    %v536 = vunpack.c.l.b16 %v236
    %v537 = vunpack.c.h.b16 %v236
    %v538 = vunpack.c.l.b16 %v237
    %v539 = vunpack.c.h.b16 %v237
    %v540 = vunpack.c.l.b16 %v238
    %v541 = vunpack.c.h.b16 %v238
    %v542 = vunpack.c.l.b16 %v239
    %v543 = vunpack.c.h.b16 %v239
    %v544 = vunpack.c.l.b16 %v240
    %v545 = vunpack.c.h.b16 %v240
    %v546 = vunpack.c.l.b16 %v241
    %v547 = vunpack.c.h.b16 %v241
    %v548 = vunpack.c.l.b16 %v242
    %v549 = vunpack.c.h.b16 %v242
    %v550 = vunpack.c.l.b16 %v243
    %v551 = vunpack.c.h.b16 %v243
    %v552 = vunpack.c.l.b16 %v244
    %v553 = vunpack.c.h.b16 %v244
    %v554 = vunpack.c.l.b16 %v245
    %v555 = vunpack.c.h.b16 %v245
    %v556 = vunpack.c.l.b16 %v246
    %v557 = vunpack.c.h.b16 %v246
    %v558 = vunpack.c.l.b16 %v247
    %v559 = vunpack.c.h.b16 %v247
    %v560 = vunpack.c.l.b16 %v248
    %v561 = vunpack.c.h.b16 %v248
    %v562 = vunpack.c.l.b16 %v249
    %v563 = vunpack.c.h.b16 %v249
    %v564 = vunpack.c.l.b16 %v250
    %v565 = vunpack.c.h.b16 %v250
    %v566 = vunpack.c.l.b16 %v251
    %v567 = vunpack.c.h.b16 %v251
    %v568 = vunpack.c.l.b16 %v252
    %v569 = vunpack.c.h.b16 %v252
    %v570 = vunpack.c.l.b16 %v253
    %v571 = vunpack.c.h.b16 %v253
    %v572 = vunpack.c.l.b16 %v254
    %v573 = vunpack.c.h.b16 %v254
    %v574 = vunpack.c.l.b16 %v255
    %v575 = vunpack.c.h.b16 %v255
    %v576 = vunpack.c.l.b16 %v256
    %v577 = vunpack.c.h.b16 %v256
    %v578 = vunpack.c.l.b16 %v257
    %v579 = vunpack.c.h.b16 %v257
    %v580 = vunpack.c.l.b16 %v258
    %v581 = vunpack.c.h.b16 %v258
    %v582 = vunpack.c.l.b16 %v259
    %v583 = vunpack.c.h.b16 %v259
    %v584 = vunpack.c.l.b16 %v260
    %v585 = vunpack.c.h.b16 %v260
    %v586 = vunpack.c.l.b16 %v261
    %v587 = vunpack.c.h.b16 %v261
    %v588 = vunpack.c.l.b16 %v262
    %v589 = vunpack.c.h.b16 %v262
    %v590 = vunpack.c.l.b16 %v263
    %v591 = vunpack.c.h.b16 %v263
    %v592 = vunpack.c.l.b16 %v264
    %v593 = vunpack.c.h.b16 %v264
    %v594 = vunpack.c.l.b16 %v265
    %v595 = vunpack.c.h.b16 %v265
    %v596 = vunpack.c.l.b16 %v266
    %v597 = vunpack.c.h.b16 %v266
    %v598 = vunpack.c.l.b16 %v267
    %v599 = vunpack.c.h.b16 %v267
    %v600 = vunpack.c.l.b16 %v268
    %v601 = vunpack.c.h.b16 %v268
    %v602 = vunpack.c.l.b16 %v269
    %v603 = vunpack.c.h.b16 %v269
    %v604 = vunpack.c.l.b16 %v270
    %v605 = vunpack.c.h.b16 %v270
    %v606 = vunpack.c.l.b16 %v271
    %v607 = vunpack.c.h.b16 %v271
    %v608 = vunpack.c.l.b16 %v272
    %v609 = vunpack.c.h.b16 %v272
    %v610 = vunpack.c.l.b16 %v273
    %v611 = vunpack.c.h.b16 %v273
    %v612 = vunpack.c.l.b16 %v274
    %v613 = vunpack.c.h.b16 %v274
    %v614 = vunpack.c.l.b16 %v275
    %v615 = vunpack.c.h.b16 %v275
    %v616 = vunpack.c.l.b16 %v276
    %v617 = vunpack.c.h.b16 %v276
    %v618 = vunpack.c.l.b16 %v277
    %v619 = vunpack.c.h.b16 %v277
    %v620 = vunpack.c.l.b16 %v278
    %v621 = vunpack.c.h.b16 %v278
    %v622 = vunpack.c.l.b16 %v279
    %v623 = vunpack.c.h.b16 %v279
    %v624 = vunpack.c.l.b16 %v280
    %v625 = vunpack.c.h.b16 %v280
    %v626 = vunpack.c.l.b16 %v281
    %v627 = vunpack.c.h.b16 %v281
    %v628 = vunpack.c.l.b16 %v282
    %v629 = vunpack.c.h.b16 %v282
    %v630 = vunpack.c.l.b16 %v283
    %v631 = vunpack.c.h.b16 %v283
    %v632 = vunpack.c.l.b16 %v284
    %v633 = vunpack.c.h.b16 %v284
    %v634 = vunpack.c.l.b16 %v285
    %v635 = vunpack.c.h.b16 %v285
    %v636 = vunpack.c.l.b16 %v286
    %v637 = vunpack.c.h.b16 %v286
    %v638 = vunpack.c.l.b16 %v287
    %v639 = vunpack.c.h.b16 %v287
    %v640 = vunpack.c.l.b16 %v288
    %v641 = vunpack.c.h.b16 %v288
    %v642 = vunpack.c.l.b16 %v289
    %v643 = vunpack.c.h.b16 %v289
    %v644 = vunpack.c.l.b16 %v290
    %v645 = vunpack.c.h.b16 %v290
    %v646 = vunpack.c.l.b16 %v291
    %v647 = vunpack.c.h.b16 %v291
    %v648 = vunpack.c.l.b16 %v292
    %v649 = vunpack.c.h.b16 %v292
    %v650 = vunpack.c.l.b16 %v293
    %v651 = vunpack.c.h.b16 %v293
    %v652 = vunpack.c.l.b16 %v294
    %v653 = vunpack.c.h.b16 %v294
    %v654 = vunpack.c.l.b16 %v295
    %v655 = vunpack.c.h.b16 %v295
    %v656 = vunpack.c.l.b16 %v296
    %v657 = vunpack.c.h.b16 %v296
    %v658 = vunpack.c.l.b16 %v297
    %v659 = vunpack.c.h.b16 %v297
    %v660 = vunpack.c.l.b16 %v298
    %v661 = vunpack.c.h.b16 %v298
    %v662 = vunpack.c.l.b16 %v299
    %v663 = vunpack.c.h.b16 %v299
    %v664 = vunpack.c.l.b16 %v300
    %v665 = vunpack.c.h.b16 %v300
    %v666 = vunpack.c.l.b16 %v301
    %v667 = vunpack.c.h.b16 %v301
    %v668 = vunpack.c.l.b16 %v302
    %v669 = vunpack.c.h.b16 %v302
    %v670 = vunpack.c.l.b16 %v303
    %v671 = vunpack.c.h.b16 %v303
    %v672 = vunpack.c.l.b16 %v304
    %v673 = vunpack.c.h.b16 %v304
    %v674 = vunpack.c.l.b16 %v305
    %v675 = vunpack.c.h.b16 %v305
    %v676 = vunpack.c.l.b16 %v306
    %v677 = vunpack.c.h.b16 %v306
    %v678 = vunpack.c.l.b16 %v307
    %v679 = vunpack.c.h.b16 %v307
    %v680 = vunpack.c.l.b16 %v308
    %v681 = vunpack.c.h.b16 %v308
    %v682 = vunpack.c.l.b16 %v309
    %v683 = vunpack.c.h.b16 %v309
    %v684 = vunpack.c.l.b16 %v310
    %v685 = vunpack.c.h.b16 %v310
    %v686 = vunpack.c.l.b16 %v311
    %v687 = vunpack.c.h.b16 %v311
    %v688 = vunpack.c.l.b16 %v312
    %v689 = vunpack.c.h.b16 %v312
    %v690 = vunpack.c.l.b16 %v313
    %v691 = vunpack.c.h.b16 %v313
    %v692 = vunpack.c.l.b16 %v314
    %v693 = vunpack.c.h.b16 %v314
    %v694 = vunpack.c.l.b16 %v315
    %v695 = vunpack.c.h.b16 %v315
    %v696 = vunpack.c.l.b16 %v316
    %v697 = vunpack.c.h.b16 %v316
    %v698 = vunpack.c.l.b16 %v317
    %v699 = vunpack.c.h.b16 %v317
    %v700 = vunpack.c.l.b16 %v318
    %v701 = vunpack.c.h.b16 %v318
    %v702 = vunpack.c.l.b16 %v319
    %v703 = vunpack.c.h.b16 %v319
    %v704 = vunpack.c.l.b16 %v320
    %v705 = vunpack.c.h.b16 %v320
    %v706 = vunpack.c.l.b16 %v321
    %v707 = vunpack.c.h.b16 %v321
    %v708 = vunpack.c.l.b16 %v322
    %v709 = vunpack.c.h.b16 %v322
    %v710 = vunpack.c.l.b16 %v323
    %v711 = vunpack.c.h.b16 %v323
    %v712 = vunpack.c.l.b16 %v324
    %v713 = vunpack.c.h.b16 %v324
    %v714 = vunpack.c.l.b16 %v325
    %v715 = vunpack.c.h.b16 %v325
    %v716 = vunpack.c.l.b16 %v326
    %v717 = vunpack.c.h.b16 %v326
    %v718 = vunpack.c.l.b16 %v327
    %v719 = vunpack.c.h.b16 %v327
    %v720 = vunpack.c.l.b16 %v328
    %v721 = vunpack.c.h.b16 %v328
    %v722 = vunpack.c.l.b16 %v329
    %v723 = vunpack.c.h.b16 %v329
    %v724 = vpack.c.b16 %v472, %v468
    %v725 = vpack.c.b16 %v473, %v469
    %v726 = vpack.c.b16 %v474, %v470
    %v727 = vpack.c.b16 %v475, %v471
    %v728 = vpack.c.b16 %v480, %v476
    %v729 = vpack.c.b16 %v481, %v477
    %v730 = vpack.c.b16 %v482, %v478
    %v731 = vpack.c.b16 %v483, %v479
    %v732 = vpack.c.b16 %v488, %v484
    %v733 = vpack.c.b16 %v489, %v485
    %v734 = vpack.c.b16 %v490, %v486
    %v735 = vpack.c.b16 %v491, %v487
    %v736 = vpack.c.b16 %v496, %v492
    %v737 = vpack.c.b16 %v497, %v493
    %v738 = vpack.c.b16 %v498, %v494
    %v739 = vpack.c.b16 %v499, %v495
    %v740 = vpack.c.b16 %v504, %v500
    %v741 = vpack.c.b16 %v505, %v501
    %v742 = vpack.c.b16 %v506, %v502
    %v743 = vpack.c.b16 %v507, %v503
    %v744 = vpack.c.b16 %v512, %v508
    %v745 = vpack.c.b16 %v513, %v509
    %v746 = vpack.c.b16 %v514, %v510
    %v747 = vpack.c.b16 %v515, %v511
    %v748 = vpack.c.b16 %v520, %v516
    %v749 = vpack.c.b16 %v521, %v517
    %v750 = vpack.c.b16 %v522, %v518
    %v751 = vpack.c.b16 %v523, %v519
    %v752 = vpack.c.b16 %v528, %v524
    %v753 = vpack.c.b16 %v529, %v525
    %v754 = vpack.c.b16 %v530, %v526
    %v755 = vpack.c.b16 %v531, %v527
    %v756 = vpack.c.b16 %v536, %v532
    %v757 = vpack.c.b16 %v537, %v533
    %v758 = vpack.c.b16 %v538, %v534
    %v759 = vpack.c.b16 %v539, %v535
    %v760 = vpack.c.b16 %v544, %v540
    %v761 = vpack.c.b16 %v545, %v541
    %v762 = vpack.c.b16 %v546, %v542
    %v763 = vpack.c.b16 %v547, %v543
    %v764 = vpack.c.b16 %v552, %v548
    %v765 = vpack.c.b16 %v553, %v549
    %v766 = vpack.c.b16 %v554, %v550
    %v767 = vpack.c.b16 %v555, %v551
    %v768 = vpack.c.b16 %v560, %v556
    %v769 = vpack.c.b16 %v561, %v557
    %v770 = vpack.c.b16 %v562, %v558
    %v771 = vpack.c.b16 %v563, %v559
    %v772 = vpack.c.b16 %v568, %v564
    %v773 = vpack.c.b16 %v569, %v565
    %v774 = vpack.c.b16 %v570, %v566
    %v775 = vpack.c.b16 %v571, %v567
    %v776 = vpack.c.b16 %v576, %v572
    %v777 = vpack.c.b16 %v577, %v573
    %v778 = vpack.c.b16 %v578, %v574
    %v779 = vpack.c.b16 %v579, %v575
    %v780 = vpack.c.b16 %v584, %v580
    %v781 = vpack.c.b16 %v585, %v581
    %v782 = vpack.c.b16 %v586, %v582
    %v783 = vpack.c.b16 %v587, %v583
    %v784 = vpack.c.b16 %v592, %v588
    %v785 = vpack.c.b16 %v593, %v589
    %v786 = vpack.c.b16 %v594, %v590
    %v787 = vpack.c.b16 %v595, %v591
    %v788 = vpack.c.b16 %v600, %v596
    %v789 = vpack.c.b16 %v601, %v597
    %v790 = vpack.c.b16 %v602, %v598
    %v791 = vpack.c.b16 %v603, %v599
    %v792 = vpack.c.b16 %v608, %v604
    %v793 = vpack.c.b16 %v609, %v605
    %v794 = vpack.c.b16 %v610, %v606
    %v795 = vpack.c.b16 %v611, %v607
    %v796 = vpack.c.b16 %v616, %v612
    %v797 = vpack.c.b16 %v617, %v613
    %v798 = vpack.c.b16 %v618, %v614
    %v799 = vpack.c.b16 %v619, %v615
    %v800 = vpack.c.b16 %v624, %v620
    %v801 = vpack.c.b16 %v625, %v621
    %v802 = vpack.c.b16 %v626, %v622
    %v803 = vpack.c.b16 %v627, %v623
    %v804 = vpack.c.b16 %v632, %v628
    %v805 = vpack.c.b16 %v633, %v629
    %v806 = vpack.c.b16 %v634, %v630
    %v807 = vpack.c.b16 %v635, %v631
    %v808 = vpack.c.b16 %v640, %v636
    %v809 = vpack.c.b16 %v641, %v637
    %v810 = vpack.c.b16 %v642, %v638
    %v811 = vpack.c.b16 %v643, %v639
    %v812 = vpack.c.b16 %v648, %v644
    %v813 = vpack.c.b16 %v649, %v645
    %v814 = vpack.c.b16 %v650, %v646
    %v815 = vpack.c.b16 %v651, %v647
    %v816 = vpack.c.b16 %v656, %v652
    %v817 = vpack.c.b16 %v657, %v653
    %v818 = vpack.c.b16 %v658, %v654
    %v819 = vpack.c.b16 %v659, %v655
    %v820 = vpack.c.b16 %v664, %v660
    %v821 = vpack.c.b16 %v665, %v661
    %v822 = vpack.c.b16 %v666, %v662
    %v823 = vpack.c.b16 %v667, %v663
    %v824 = vpack.c.b16 %v672, %v668
    %v825 = vpack.c.b16 %v673, %v669
    %v826 = vpack.c.b16 %v674, %v670
    %v827 = vpack.c.b16 %v675, %v671
    %v828 = vpack.c.b16 %v680, %v676
    %v829 = vpack.c.b16 %v681, %v677
    %v830 = vpack.c.b16 %v682, %v678
    %v831 = vpack.c.b16 %v683, %v679
    %v832 = vpack.c.b16 %v688, %v684
    %v833 = vpack.c.b16 %v689, %v685
    %v834 = vpack.c.b16 %v690, %v686
    %v835 = vpack.c.b16 %v691, %v687
    %v836 = vpack.c.b16 %v696, %v692
    %v837 = vpack.c.b16 %v697, %v693
    %v838 = vpack.c.b16 %v698, %v694
    %v839 = vpack.c.b16 %v699, %v695
    %v840 = vpack.c.b16 %v704, %v700
    %v841 = vpack.c.b16 %v705, %v701
    %v842 = vpack.c.b16 %v706, %v702
    %v843 = vpack.c.b16 %v707, %v703
    %v844 = vpack.c.b16 %v712, %v708
    %v845 = vpack.c.b16 %v713, %v709
    %v846 = vpack.c.b16 %v714, %v710
    %v847 = vpack.c.b16 %v715, %v711
    %v848 = vpack.c.b16 %v720, %v716
    %v849 = vpack.c.b16 %v721, %v717
    %v850 = vpack.c.b16 %v722, %v718
    %v851 = vpack.c.b16 %v723, %v719
    %980 = vmatpush.bf16.msra.mxu0 %v752
    %981 = vmatpush.bf16.msra.mxu0 %v748
    %982 = vmatpush.bf16.msra.mxu0 %v744
    %983 = vmatpush.bf16.msra.mxu0 %v740
    %984 = vmatpush.bf16.msra.mxu0 %v736
    %985 = vmatpush.bf16.msra.mxu0 %v732
    %986 = vmatpush.bf16.msra.mxu0 %v728
    %987 = vmatpush.bf16.msra.mxu0 %v724
    %988 = vmatmul.bf16.gmra.mxu0 %v198
    %v989 = vpop.f32.mrf.mxu0
    %v990 = vadd.f32 %v332, %v989
    %v991 = vpop.f32.mrf.mxu0
    %992 = vdwg.mxu0
    %993 = vmatpush.bf16.msra.mxu0 %v784
    %994 = vmatpush.bf16.msra.mxu0 %v780
    %995 = vmatpush.bf16.msra.mxu0 %v776
    %996 = vmatpush.bf16.msra.mxu0 %v772
    %997 = vmatpush.bf16.msra.mxu0 %v768
    %998 = vmatpush.bf16.msra.mxu0 %v764
    %999 = vmatpush.bf16.msra.mxu0 %v760
    %1000 = vmatpush.bf16.msra.mxu0 %v756
    %1001 = vmatmul.bf16.gmra.mxu0 %v199
    %v1002 = vpop.f32.mrf.mxu0
    %v1003 = vadd.f32 %v990, %v1002
    %v1004 = vpop.f32.mrf.mxu0
    %1005 = vdwg.mxu0
    %1006 = vmatpush.bf16.msra.mxu0 %v816
    %1007 = vmatpush.bf16.msra.mxu0 %v812
    %1008 = vmatpush.bf16.msra.mxu0 %v808
    %1009 = vmatpush.bf16.msra.mxu0 %v804
    %1010 = vmatpush.bf16.msra.mxu0 %v800
    %1011 = vmatpush.bf16.msra.mxu0 %v796
    %1012 = vmatpush.bf16.msra.mxu0 %v792
    %1013 = vmatpush.bf16.msra.mxu0 %v788
    %1014 = vmatmul.bf16.gmra.mxu0 %v200
    %v1015 = vpop.f32.mrf.mxu0
    %v1016 = vadd.f32 %v1003, %v1015
    %v1017 = vpop.f32.mrf.mxu0
    %1018 = vdwg.mxu0
    %1019 = vmatpush.bf16.msra.mxu0 %v848
    %1020 = vmatpush.bf16.msra.mxu0 %v844
    %1021 = vmatpush.bf16.msra.mxu0 %v840
    %1022 = vmatpush.bf16.msra.mxu0 %v836
    %1023 = vmatpush.bf16.msra.mxu0 %v832
    %1024 = vmatpush.bf16.msra.mxu0 %v828
    %1025 = vmatpush.bf16.msra.mxu0 %v824
    %1026 = vmatpush.bf16.msra.mxu0 %v820
    %1027 = vmatmul.bf16.gmra.mxu0 %v201
    %v1028 = vpop.f32.mrf.mxu0
    %v1029 = vadd.f32 %v1016, %v1028
    %v1030 = vpop.f32.mrf.mxu0
    %1031 = vdwg.mxu0
    %1032 = vmatpush.bf16.msra.mxu0 %v753
    %1033 = vmatpush.bf16.msra.mxu0 %v749
    %1034 = vmatpush.bf16.msra.mxu0 %v745
    %1035 = vmatpush.bf16.msra.mxu0 %v741
    %1036 = vmatpush.bf16.msra.mxu0 %v737
    %1037 = vmatpush.bf16.msra.mxu0 %v733
    %1038 = vmatpush.bf16.msra.mxu0 %v729
    %1039 = vmatpush.bf16.msra.mxu0 %v725
    %1040 = vmatmul.bf16.gmra.mxu0 %v198
    %v1041 = vpop.f32.mrf.mxu0
    %v1042 = vadd.f32 %v333, %v1041
    %v1043 = vpop.f32.mrf.mxu0
    %1044 = vdwg.mxu0
    %1045 = vmatpush.bf16.msra.mxu0 %v785
    %1046 = vmatpush.bf16.msra.mxu0 %v781
    %1047 = vmatpush.bf16.msra.mxu0 %v777
    %1048 = vmatpush.bf16.msra.mxu0 %v773
    %1049 = vmatpush.bf16.msra.mxu0 %v769
    %1050 = vmatpush.bf16.msra.mxu0 %v765
    %1051 = vmatpush.bf16.msra.mxu0 %v761
    %1052 = vmatpush.bf16.msra.mxu0 %v757
    %1053 = vmatmul.bf16.gmra.mxu0 %v199
    %v1054 = vpop.f32.mrf.mxu0
    %v1055 = vadd.f32 %v1042, %v1054
    %v1056 = vpop.f32.mrf.mxu0
    %1057 = vdwg.mxu0
    %1058 = vmatpush.bf16.msra.mxu0 %v817
    %1059 = vmatpush.bf16.msra.mxu0 %v813
    %1060 = vmatpush.bf16.msra.mxu0 %v809
    %1061 = vmatpush.bf16.msra.mxu0 %v805
    %1062 = vmatpush.bf16.msra.mxu0 %v801
    %1063 = vmatpush.bf16.msra.mxu0 %v797
    %1064 = vmatpush.bf16.msra.mxu0 %v793
    %1065 = vmatpush.bf16.msra.mxu0 %v789
    %1066 = vmatmul.bf16.gmra.mxu0 %v200
    %v1067 = vpop.f32.mrf.mxu0
    %v1068 = vadd.f32 %v1055, %v1067
    %v1069 = vpop.f32.mrf.mxu0
    %1070 = vdwg.mxu0
    %1071 = vmatpush.bf16.msra.mxu0 %v849
    %1072 = vmatpush.bf16.msra.mxu0 %v845
    %1073 = vmatpush.bf16.msra.mxu0 %v841
    %1074 = vmatpush.bf16.msra.mxu0 %v837
    %1075 = vmatpush.bf16.msra.mxu0 %v833
    %1076 = vmatpush.bf16.msra.mxu0 %v829
    %1077 = vmatpush.bf16.msra.mxu0 %v825
    %1078 = vmatpush.bf16.msra.mxu0 %v821
    %1079 = vmatmul.bf16.gmra.mxu0 %v201
    %v1080 = vpop.f32.mrf.mxu0
    %v1081 = vadd.f32 %v1068, %v1080
    %v1082 = vpop.f32.mrf.mxu0
    %1083 = vdwg.mxu0
    %1084 = vmatpush.bf16.msra.mxu0 %v754
    %1085 = vmatpush.bf16.msra.mxu0 %v750
    %1086 = vmatpush.bf16.msra.mxu0 %v746
    %1087 = vmatpush.bf16.msra.mxu0 %v742
    %1088 = vmatpush.bf16.msra.mxu0 %v738
    %1089 = vmatpush.bf16.msra.mxu0 %v734
    %1090 = vmatpush.bf16.msra.mxu0 %v730
    %1091 = vmatpush.bf16.msra.mxu0 %v726
    %1092 = vmatmul.bf16.gmra.mxu0 %v198
    %v1093 = vpop.f32.mrf.mxu0
    %v1094 = vadd.f32 %v334, %v1093
    %v1095 = vpop.f32.mrf.mxu0
    %1096 = vdwg.mxu0
    %1097 = vmatpush.bf16.msra.mxu0 %v786
    %1098 = vmatpush.bf16.msra.mxu0 %v782
    %1099 = vmatpush.bf16.msra.mxu0 %v778
    %1100 = vmatpush.bf16.msra.mxu0 %v774
    %1101 = vmatpush.bf16.msra.mxu0 %v770
    %1102 = vmatpush.bf16.msra.mxu0 %v766
    %1103 = vmatpush.bf16.msra.mxu0 %v762
    %1104 = vmatpush.bf16.msra.mxu0 %v758
    %1105 = vmatmul.bf16.gmra.mxu0 %v199
    %v1106 = vpop.f32.mrf.mxu0
    %v1107 = vadd.f32 %v1094, %v1106
    %v1108 = vpop.f32.mrf.mxu0
    %1109 = vdwg.mxu0
    %1110 = vmatpush.bf16.msra.mxu0 %v818
    %1111 = vmatpush.bf16.msra.mxu0 %v814
    %1112 = vmatpush.bf16.msra.mxu0 %v810
    %1113 = vmatpush.bf16.msra.mxu0 %v806
    %1114 = vmatpush.bf16.msra.mxu0 %v802
    %1115 = vmatpush.bf16.msra.mxu0 %v798
    %1116 = vmatpush.bf16.msra.mxu0 %v794
    %1117 = vmatpush.bf16.msra.mxu0 %v790
    %1118 = vmatmul.bf16.gmra.mxu0 %v200
    %v1119 = vpop.f32.mrf.mxu0
    %v1120 = vadd.f32 %v1107, %v1119
    %v1121 = vpop.f32.mrf.mxu0
    %1122 = vdwg.mxu0
    %1123 = vmatpush.bf16.msra.mxu0 %v850
    %1124 = vmatpush.bf16.msra.mxu0 %v846
    %1125 = vmatpush.bf16.msra.mxu0 %v842
    %1126 = vmatpush.bf16.msra.mxu0 %v838
    %1127 = vmatpush.bf16.msra.mxu0 %v834
    %1128 = vmatpush.bf16.msra.mxu0 %v830
    %1129 = vmatpush.bf16.msra.mxu0 %v826
    %1130 = vmatpush.bf16.msra.mxu0 %v822
    %1131 = vmatmul.bf16.gmra.mxu0 %v201
    %v1132 = vpop.f32.mrf.mxu0
    %v1133 = vadd.f32 %v1120, %v1132
    %v1134 = vpop.f32.mrf.mxu0
    %1135 = vdwg.mxu0
    %1136 = vmatpush.bf16.msra.mxu0 %v755
    %1137 = vmatpush.bf16.msra.mxu0 %v751
    %1138 = vmatpush.bf16.msra.mxu0 %v747
    %1139 = vmatpush.bf16.msra.mxu0 %v743
    %1140 = vmatpush.bf16.msra.mxu0 %v739
    %1141 = vmatpush.bf16.msra.mxu0 %v735
    %1142 = vmatpush.bf16.msra.mxu0 %v731
    %1143 = vmatpush.bf16.msra.mxu0 %v727
    %1144 = vmatmul.bf16.gmra.mxu0 %v198
    %v1145 = vpop.f32.mrf.mxu0
    %v1146 = vadd.f32 %v335, %v1145
    %v1147 = vpop.f32.mrf.mxu0
    %1148 = vdwg.mxu0
    %1149 = vmatpush.bf16.msra.mxu0 %v787
    %1150 = vmatpush.bf16.msra.mxu0 %v783
    %1151 = vmatpush.bf16.msra.mxu0 %v779
    %1152 = vmatpush.bf16.msra.mxu0 %v775
    %1153 = vmatpush.bf16.msra.mxu0 %v771
    %1154 = vmatpush.bf16.msra.mxu0 %v767
    %1155 = vmatpush.bf16.msra.mxu0 %v763
    %1156 = vmatpush.bf16.msra.mxu0 %v759
    %1157 = vmatmul.bf16.gmra.mxu0 %v199
    %v1158 = vpop.f32.mrf.mxu0
    %v1159 = vadd.f32 %v1146, %v1158
    %v1160 = vpop.f32.mrf.mxu0
    %1161 = vdwg.mxu0
    %1162 = vmatpush.bf16.msra.mxu0 %v819
    %1163 = vmatpush.bf16.msra.mxu0 %v815
    %1164 = vmatpush.bf16.msra.mxu0 %v811
    %1165 = vmatpush.bf16.msra.mxu0 %v807
    %1166 = vmatpush.bf16.msra.mxu0 %v803
    %1167 = vmatpush.bf16.msra.mxu0 %v799
    %1168 = vmatpush.bf16.msra.mxu0 %v795
    %1169 = vmatpush.bf16.msra.mxu0 %v791
    %1170 = vmatmul.bf16.gmra.mxu0 %v200
    %v1171 = vpop.f32.mrf.mxu0
    %v1172 = vadd.f32 %v1159, %v1171
    %v1173 = vpop.f32.mrf.mxu0
    %1174 = vdwg.mxu0
    %1175 = vmatpush.bf16.msra.mxu0 %v851
    %1176 = vmatpush.bf16.msra.mxu0 %v847
    %1177 = vmatpush.bf16.msra.mxu0 %v843
    %1178 = vmatpush.bf16.msra.mxu0 %v839
    %1179 = vmatpush.bf16.msra.mxu0 %v835
    %1180 = vmatpush.bf16.msra.mxu0 %v831
    %1181 = vmatpush.bf16.msra.mxu0 %v827
    %1182 = vmatpush.bf16.msra.mxu0 %v823
    %1183 = vmatmul.bf16.gmra.mxu0 %v201
    %v1184 = vpop.f32.mrf.mxu0
    %v1185 = vadd.f32 %v1172, %v1184
    %v1186 = vpop.f32.mrf.mxu0
    %1187 = vdwg.mxu0
    %v1188 = vtanh.pop %v1029
    %v1189 = vtanh.pop %v1081
    %v1190 = vtanh.pop %v1133
    %v1191 = vtanh.pop %v1185
    %v1192 = vpack.c.bf16 %v1188, %v1188
    %v1193 = vpack.c.bf16 %v1189, %v1189
    %v1194 = vpack.c.bf16 %v1190, %v1190
    %v1195 = vpack.c.bf16 %v1191, %v1191
    %v1196 = vld [vmem:[#allocation8] sm:$0xf]
    %v1197 = vld [vmem:[#allocation8 + $0x4] sm:$0xf]
    %v1198 = vld [vmem:[#allocation8 + $0x8] sm:$0xf]
    %v1199 = vld [vmem:[#allocation8 + $0xc] sm:$0xf]
    %v1200 = vld [vmem:[#allocation8 + $0x10] sm:$0xf]
    %v1201 = vld [vmem:[#allocation8 + $0x14] sm:$0xf]
    %v1202 = vld [vmem:[#allocation8 + $0x18] sm:$0xf]
    %v1203 = vld [vmem:[#allocation8 + $0x1c] sm:$0xf]
    %v1204 = vld [vmem:[#allocation8 + $0x20] sm:$0xf]
    %v1205 = vld [vmem:[#allocation8 + $0x24] sm:$0xf]
    %v1206 = vld [vmem:[#allocation8 + $0x28] sm:$0xf]
    %v1207 = vld [vmem:[#allocation8 + $0x2c] sm:$0xf]
    %v1208 = vld [vmem:[#allocation8 + $0x30] sm:$0xf]
    %v1209 = vld [vmem:[#allocation8 + $0x34] sm:$0xf]
    %v1210 = vld [vmem:[#allocation8 + $0x38] sm:$0xf]
    %v1211 = vld [vmem:[#allocation8 + $0x3c] sm:$0xf]
    %v1212 = vld [vmem:[#allocation8 + $0x40] sm:$0xf]
    %v1213 = vld [vmem:[#allocation8 + $0x44] sm:$0xf]
    %v1214 = vld [vmem:[#allocation8 + $0x48] sm:$0xf]
    %v1215 = vld [vmem:[#allocation8 + $0x4c] sm:$0xf]
    %v1216 = vld [vmem:[#allocation8 + $0x50] sm:$0xf]
    %v1217 = vld [vmem:[#allocation8 + $0x54] sm:$0xf]
    %v1218 = vld [vmem:[#allocation8 + $0x58] sm:$0xf]
    %v1219 = vld [vmem:[#allocation8 + $0x5c] sm:$0xf]
    %v1220 = vld [vmem:[#allocation8 + $0x60] sm:$0xf]
    %v1221 = vld [vmem:[#allocation8 + $0x64] sm:$0xf]
    %v1222 = vld [vmem:[#allocation8 + $0x68] sm:$0xf]
    %v1223 = vld [vmem:[#allocation8 + $0x6c] sm:$0xf]
    %v1224 = vld [vmem:[#allocation8 + $0x70] sm:$0xf]
    %v1225 = vld [vmem:[#allocation8 + $0x74] sm:$0xf]
    %v1226 = vld [vmem:[#allocation8 + $0x78] sm:$0xf]
    %v1227 = vld [vmem:[#allocation8 + $0x7c] sm:$0xf]
    %v1228 = vld [vmem:[#allocation8 + $0x80] sm:$0xf]
    %v1229 = vld [vmem:[#allocation8 + $0x84] sm:$0xf]
    %v1230 = vld [vmem:[#allocation8 + $0x88] sm:$0xf]
    %v1231 = vld [vmem:[#allocation8 + $0x8c] sm:$0xf]
    %v1232 = vld [vmem:[#allocation8 + $0x90] sm:$0xf]
    %v1233 = vld [vmem:[#allocation8 + $0x94] sm:$0xf]
    %v1234 = vld [vmem:[#allocation8 + $0x98] sm:$0xf]
    %v1235 = vld [vmem:[#allocation8 + $0x9c] sm:$0xf]
    %v1236 = vld [vmem:[#allocation8 + $0xa0] sm:$0xf]
    %v1237 = vld [vmem:[#allocation8 + $0xa4] sm:$0xf]
    %v1238 = vld [vmem:[#allocation8 + $0xa8] sm:$0xf]
    %v1239 = vld [vmem:[#allocation8 + $0xac] sm:$0xf]
    %v1240 = vld [vmem:[#allocation8 + $0xb0] sm:$0xf]
    %v1241 = vld [vmem:[#allocation8 + $0xb4] sm:$0xf]
    %v1242 = vld [vmem:[#allocation8 + $0xb8] sm:$0xf]
    %v1243 = vld [vmem:[#allocation8 + $0xbc] sm:$0xf]
    %v1244 = vld [vmem:[#allocation8 + $0xc0] sm:$0xf]
    %v1245 = vld [vmem:[#allocation8 + $0xc4] sm:$0xf]
    %v1246 = vld [vmem:[#allocation8 + $0xc8] sm:$0xf]
    %v1247 = vld [vmem:[#allocation8 + $0xcc] sm:$0xf]
    %v1248 = vld [vmem:[#allocation8 + $0xd0] sm:$0xf]
    %v1249 = vld [vmem:[#allocation8 + $0xd4] sm:$0xf]
    %v1250 = vld [vmem:[#allocation8 + $0xd8] sm:$0xf]
    %v1251 = vld [vmem:[#allocation8 + $0xdc] sm:$0xf]
    %v1252 = vld [vmem:[#allocation8 + $0xe0] sm:$0xf]
    %v1253 = vld [vmem:[#allocation8 + $0xe4] sm:$0xf]
    %v1254 = vld [vmem:[#allocation8 + $0xe8] sm:$0xf]
    %v1255 = vld [vmem:[#allocation8 + $0xec] sm:$0xf]
    %v1256 = vld [vmem:[#allocation8 + $0xf0] sm:$0xf]
    %v1257 = vld [vmem:[#allocation8 + $0xf4] sm:$0xf]
    %v1258 = vld [vmem:[#allocation8 + $0xf8] sm:$0xf]
    %v1259 = vld [vmem:[#allocation8 + $0xfc] sm:$0xf]
    %v1260 = vld [vmem:[%s7] sm:$0x1]
    %v1262 = vperm.slane %v1260, 0
    %v1328 = vunpack.c.l.b16 %v1196
    %v1329 = vunpack.c.l.b16 %v1197
    %v1330 = vunpack.c.l.b16 %v1198
    %v1331 = vunpack.c.l.b16 %v1199
    %v1332 = vunpack.c.l.b16 %v1200
    %v1333 = vunpack.c.l.b16 %v1201
    %v1334 = vunpack.c.l.b16 %v1202
    %v1335 = vunpack.c.l.b16 %v1203
    %v1336 = vunpack.c.l.b16 %v1204
    %v1337 = vunpack.c.l.b16 %v1205
    %v1338 = vunpack.c.l.b16 %v1206
    %v1339 = vunpack.c.l.b16 %v1207
    %v1340 = vunpack.c.l.b16 %v1208
    %v1341 = vunpack.c.l.b16 %v1209
    %v1342 = vunpack.c.l.b16 %v1210
    %v1343 = vunpack.c.l.b16 %v1211
    %v1344 = vunpack.c.l.b16 %v1212
    %v1345 = vunpack.c.l.b16 %v1213
    %v1346 = vunpack.c.l.b16 %v1214
    %v1347 = vunpack.c.l.b16 %v1215
    %v1348 = vunpack.c.l.b16 %v1216
    %v1349 = vunpack.c.l.b16 %v1217
    %v1350 = vunpack.c.l.b16 %v1218
    %v1351 = vunpack.c.l.b16 %v1219
    %v1352 = vunpack.c.l.b16 %v1220
    %v1353 = vunpack.c.l.b16 %v1221
    %v1354 = vunpack.c.l.b16 %v1222
    %v1355 = vunpack.c.l.b16 %v1223
    %v1356 = vunpack.c.l.b16 %v1224
    %v1357 = vunpack.c.l.b16 %v1225
    %v1358 = vunpack.c.l.b16 %v1226
    %v1359 = vunpack.c.l.b16 %v1227
    %v1360 = vunpack.c.l.b16 %v1228
    %v1361 = vunpack.c.l.b16 %v1229
    %v1362 = vunpack.c.l.b16 %v1230
    %v1363 = vunpack.c.l.b16 %v1231
    %v1364 = vunpack.c.l.b16 %v1232
    %v1365 = vunpack.c.l.b16 %v1233
    %v1366 = vunpack.c.l.b16 %v1234
    %v1367 = vunpack.c.l.b16 %v1235
    %v1368 = vunpack.c.l.b16 %v1236
    %v1369 = vunpack.c.l.b16 %v1237
    %v1370 = vunpack.c.l.b16 %v1238
    %v1371 = vunpack.c.l.b16 %v1239
    %v1372 = vunpack.c.l.b16 %v1240
    %v1373 = vunpack.c.l.b16 %v1241
    %v1374 = vunpack.c.l.b16 %v1242
    %v1375 = vunpack.c.l.b16 %v1243
    %v1376 = vunpack.c.l.b16 %v1244
    %v1377 = vunpack.c.l.b16 %v1245
    %v1378 = vunpack.c.l.b16 %v1246
    %v1379 = vunpack.c.l.b16 %v1247
    %v1380 = vunpack.c.l.b16 %v1248
    %v1381 = vunpack.c.l.b16 %v1249
    %v1382 = vunpack.c.l.b16 %v1250
    %v1383 = vunpack.c.l.b16 %v1251
    %v1384 = vunpack.c.l.b16 %v1252
    %v1385 = vunpack.c.l.b16 %v1253
    %v1386 = vunpack.c.l.b16 %v1254
    %v1387 = vunpack.c.l.b16 %v1255
    %v1388 = vunpack.c.l.b16 %v1256
    %v1389 = vunpack.c.l.b16 %v1257
    %v1390 = vunpack.c.l.b16 %v1258
    %v1391 = vunpack.c.l.b16 %v1259
    %v1392 = vpack.c.b16 %v1329, %v1328
    %v1393 = vpack.c.b16 %v1331, %v1330
    %v1394 = vpack.c.b16 %v1333, %v1332
    %v1395 = vpack.c.b16 %v1335, %v1334
    %v1396 = vpack.c.b16 %v1337, %v1336
    %v1397 = vpack.c.b16 %v1339, %v1338
    %v1398 = vpack.c.b16 %v1341, %v1340
    %v1399 = vpack.c.b16 %v1343, %v1342
    %v1400 = vpack.c.b16 %v1345, %v1344
    %v1401 = vpack.c.b16 %v1347, %v1346
    %v1402 = vpack.c.b16 %v1349, %v1348
    %v1403 = vpack.c.b16 %v1351, %v1350
    %v1404 = vpack.c.b16 %v1353, %v1352
    %v1405 = vpack.c.b16 %v1355, %v1354
    %v1406 = vpack.c.b16 %v1357, %v1356
    %v1407 = vpack.c.b16 %v1359, %v1358
    %v1408 = vpack.c.b16 %v1361, %v1360
    %v1409 = vpack.c.b16 %v1363, %v1362
    %v1410 = vpack.c.b16 %v1365, %v1364
    %v1411 = vpack.c.b16 %v1367, %v1366
    %v1412 = vpack.c.b16 %v1369, %v1368
    %v1413 = vpack.c.b16 %v1371, %v1370
    %v1414 = vpack.c.b16 %v1373, %v1372
    %v1415 = vpack.c.b16 %v1375, %v1374
    %v1416 = vpack.c.b16 %v1377, %v1376
    %v1417 = vpack.c.b16 %v1379, %v1378
    %v1418 = vpack.c.b16 %v1381, %v1380
    %v1419 = vpack.c.b16 %v1383, %v1382
    %v1420 = vpack.c.b16 %v1385, %v1384
    %v1421 = vpack.c.b16 %v1387, %v1386
    %v1422 = vpack.c.b16 %v1389, %v1388
    %v1423 = vpack.c.b16 %v1391, %v1390
    %1456 = vmatpush.bf16.msra.mxu0 %v1399
    %1457 = vmatpush.bf16.msra.mxu0 %v1398
    %1458 = vmatpush.bf16.msra.mxu0 %v1397
    %1459 = vmatpush.bf16.msra.mxu0 %v1396
    %1460 = vmatpush.bf16.msra.mxu0 %v1395
    %1461 = vmatpush.bf16.msra.mxu0 %v1394
    %1462 = vmatpush.bf16.msra.mxu0 %v1393
    %1463 = vmatpush.bf16.msra.mxu0 %v1392
    %1464 = vmatmul.bf16.gmra.mxu0 %v1192
    %v1465 = vpop.f32.mrf.mxu0
    %v1466 = vadd.f32 %v1262, %v1465
    %v1467 = vpop.f32.mrf.mxu0
    %1468 = vdwg.mxu0
    %1469 = vmatpush.bf16.msra.mxu0 %v1407
    %1470 = vmatpush.bf16.msra.mxu0 %v1406
    %1471 = vmatpush.bf16.msra.mxu0 %v1405
    %1472 = vmatpush.bf16.msra.mxu0 %v1404
    %1473 = vmatpush.bf16.msra.mxu0 %v1403
    %1474 = vmatpush.bf16.msra.mxu0 %v1402
    %1475 = vmatpush.bf16.msra.mxu0 %v1401
    %1476 = vmatpush.bf16.msra.mxu0 %v1400
    %1477 = vmatmul.bf16.gmra.mxu0 %v1193
    %v1478 = vpop.f32.mrf.mxu0
    %v1479 = vadd.f32 %v1466, %v1478
    %v1480 = vpop.f32.mrf.mxu0
    %1481 = vdwg.mxu0
    %1482 = vmatpush.bf16.msra.mxu0 %v1415
    %1483 = vmatpush.bf16.msra.mxu0 %v1414
    %1484 = vmatpush.bf16.msra.mxu0 %v1413
    %1485 = vmatpush.bf16.msra.mxu0 %v1412
    %1486 = vmatpush.bf16.msra.mxu0 %v1411
    %1487 = vmatpush.bf16.msra.mxu0 %v1410
    %1488 = vmatpush.bf16.msra.mxu0 %v1409
    %1489 = vmatpush.bf16.msra.mxu0 %v1408
    %1490 = vmatmul.bf16.gmra.mxu0 %v1194
    %v1491 = vpop.f32.mrf.mxu0
    %v1492 = vadd.f32 %v1479, %v1491
    %v1493 = vpop.f32.mrf.mxu0
    %1494 = vdwg.mxu0
    %1495 = vmatpush.bf16.msra.mxu0 %v1423
    %1496 = vmatpush.bf16.msra.mxu0 %v1422
    %1497 = vmatpush.bf16.msra.mxu0 %v1421
    %1498 = vmatpush.bf16.msra.mxu0 %v1420
    %1499 = vmatpush.bf16.msra.mxu0 %v1419
    %1500 = vmatpush.bf16.msra.mxu0 %v1418
    %1501 = vmatpush.bf16.msra.mxu0 %v1417
    %1502 = vmatpush.bf16.msra.mxu0 %v1416
    %1503 = vmatmul.bf16.gmra.mxu0 %v1195
    %v1504 = vpop.f32.mrf.mxu0
    %v1505 = vadd.f32 %v1492, %v1504
    %v1506 = vpop.f32.mrf.mxu0
    %1507 = vdwg.mxu0
    %s1508 = sld [smem:[#allocation2]]
    %v1509 = vstv %s1508
    %v1510 = vmul.f32 %v1509, %v1505
    %v1511 = vtanh.pop %v1510
    %1512 = vst [vmem:[#allocation9] sm:$0xff] %v1511
    // Predicated region
    $region46: #{hash_head_forward.1} parent=1 // pred_check
      _
    $region47: #{hash_head_forward.1} parent=1 // pred_check_branch
      %1514 = sbr.rel (0) target = $region49
    $region48: #{hash_head_forward.1} parent=1 // pred_region
      %1516 = vsyncadd [#allocation5], 0
      %s1518 = sshll.u32 [#allocation9], 4
      %s1519 = int_to_ptr.vmem [resolvable:$true] %s1518
      %s1520 = sshll.u32 %s8, 4
      %s1521 = int_to_ptr.hbm [resolvable:$true] %s1520
      %1523 = dma.vmem_to_hbm [thread:$0]  %s1519, 128, %s1521, [#allocation5]
    $region49: #{hash_head_forward.1} parent=1 // pred_fallthru
      _
    // Predicated region
    $region50: #{hash_head_forward.1} parent=1 // pred_check
      _
    $region51: #{hash_head_forward.1} parent=1 // pred_check_branch
      %1525 = sbr.rel (0) target = $region53
    $region52: #{hash_head_forward.1} parent=1 // pred_region
      %1527 = dma.done [#allocation5], 128
    $region53: #{hash_head_forward.1} parent=1 // pred_fallthru
      _
    %1528 = vsyncpa [#allocation4], 1
    %1529 = vsyncpa [#allocation7], 1
    %1530 = vsyncpa [#allocation5], 1

</llo_original>
